<compile_context>
chip_gen: v7x
topology: tpu7x:2x2x1
jax: 0.10.0
libtpu: 0.0.40
codegen_flags: <defaults>
</compile_context>

<pallas_src>
import jax
import jax.numpy as jnp
import numpy as np
from jax.experimental import pallas as pl
from jax.experimental.pallas import tpu as pltpu

# Logical layer sizes (match the PyTorch module).
K_IN, H1, H2, H3 = 1600, 784, 256, 32
P_IN, P_H, A = 2, 32, 4
# Lane/MXU-friendly padded sizes (zeros in the padding keep results unchanged).
K_PAD = 1792      # 14 * 128
H1P = 896         # 7 * 128
TK = 256          # fc1 K-tile -> 7 pipelined steps


def policy_grad_kernel(frame_ref, pose_ref,
                       w1_ref, b1_ref, w2_ref, b2_ref, w3_ref, b3_ref,
                       wp_ref, bp_ref, wpf_ref, wpp_ref, bpol_ref,
                       out_ref, acc_ref):
    k = pl.program_id(1)

    # fc1 accumulated over K tiles; bias hoisted into the accumulator init.
    @pl.when(k == 0)
    def _():
        acc_ref[...] = jnp.broadcast_to(b1_ref[...], acc_ref.shape)

    acc_ref[...] += jnp.dot(frame_ref[...], w1_ref[...],
                            preferred_element_type=jnp.float32)

    # Cheap, lane-sparse tail stays fused and runs once after the last K tile.
    @pl.when(k == pl.num_programs(1) - 1)
    def _():
        bf = jnp.bfloat16
        h1 = jnp.maximum(acc_ref[...], 0.0).astype(bf)
        h2 = jnp.dot(h1, w2_ref[...],
                     preferred_element_type=jnp.float32) + b2_ref[...]
        h2 = jnp.maximum(h2, 0.0).astype(bf)
        h3 = jnp.dot(h2, w3_ref[...],
                     preferred_element_type=jnp.float32) + b3_ref[...]
        h3 = jnp.maximum(h3, 0.0).astype(bf)
        p = jnp.dot(pose_ref[...], wp_ref[...],
                    preferred_element_type=jnp.float32) + bp_ref[...]
        p = jnp.maximum(p, 0.0).astype(bf)
        # fc_pol on concat([h3, p], dim=1) as split matmuls (exact identity):
        # [h3|p] @ [Wf;Wp] = h3 @ Wf + p @ Wp
        logits = (jnp.dot(h3, wpf_ref[...], preferred_element_type=jnp.float32)
                  + jnp.dot(p, wpp_ref[...], preferred_element_type=jnp.float32)
                  + bpol_ref[...])
        m = jnp.max(logits, axis=-1, keepdims=True)
        e = jnp.exp(logits - m)
        out_ref[...] = e / jnp.sum(e, axis=-1, keepdims=True)


def _pick_tm(batch):
    """Batch tile: fill MXU rows at large batch, round up to sublane multiple."""
    if batch >= 256:
        return 256
    return ((batch + 7) // 8) * 8


def network_policy_gradient_forward(frame, robot_pose, prepared_params):
    """frame: [B, 40, 40] (anything flattening to [B,1600]); robot_pose: [B,2].
    prepared_params: output of prepare_params() (bf16, lane-padded weights)."""
    B = frame.shape[0]
    TM = _pick_tm(B)
    B_pad = -(-B // TM) * TM

    x = frame.reshape(B, -1).astype(jnp.bfloat16)
    x = jnp.pad(x, ((0, B_pad - B), (0, K_PAD - K_IN)))
    rp = robot_pose.reshape(B, -1).astype(jnp.bfloat16)
    rp = jnp.pad(rp, ((0, B_pad - B), (0, 0)))

    grid = (B_pad // TM, K_PAD // TK)

    in_specs = [
        pl.BlockSpec((TM, TK),   lambda b, k: (b, k)),   # frame (K-tiled)
        pl.BlockSpec((TM, P_IN), lambda b, k: (b, 0)),   # pose
        pl.BlockSpec((TK, H1P),  lambda b, k: (k, 0)),   # w1 (K-tiled)
        pl.BlockSpec((1, H1P),   lambda b, k: (0, 0)),   # b1
        pl.BlockSpec((H1P, H2),  lambda b, k: (0, 0)),   # w2 (resident)
        pl.BlockSpec((1, H2),    lambda b, k: (0, 0)),   # b2
        pl.BlockSpec((H2, H3),   lambda b, k: (0, 0)),   # w3
        pl.BlockSpec((1, H3),    lambda b, k: (0, 0)),   # b3
        pl.BlockSpec((P_IN, P_H), lambda b, k: (0, 0)),  # wp
        pl.BlockSpec((1, P_H),   lambda b, k: (0, 0)),   # bp
        pl.BlockSpec((H3, A),    lambda b, k: (0, 0)),   # wpol (frame half)
        pl.BlockSpec((P_H, A),   lambda b, k: (0, 0)),   # wpol (pose half)
        pl.BlockSpec((1, A),     lambda b, k: (0, 0)),   # bpol
    ]
    out_specs = pl.BlockSpec((TM, A), lambda b, k: (b, 0))

    out = pl.pallas_call(
        policy_grad_kernel,
        out_shape=jax.ShapeDtypeStruct((B_pad, A), jnp.float32),
        grid=grid,
        in_specs=in_specs,
        out_specs=out_specs,
        scratch_shapes=[pltpu.VMEM((TM, H1P), jnp.float32)],
        compiler_params=pltpu.CompilerParams(
            dimension_semantics=("parallel", "arbitrary"),
            vmem_limit_bytes=32 * 1024 * 1024),
    )(x, rp, *prepared_params)
    return out[:B]


def make_params(key):
    """Logical (unpadded) parameters. Shapes match the PyTorch module:
       fc1: 1600->784, fc2: 784->256, fc3: 256->32, fc_pose: 2->32, fc_pol: 64->4.
       Weights stored as [in, out]; biases as [1, out] (f32)."""
    ks = jax.random.split(key, 6)
    scale = 0.05
    w1 = scale * jax.random.normal(ks[0], (K_IN, H1), jnp.float32)
    b1 = jnp.zeros((1, H1), jnp.float32)
    w2 = scale * jax.random.normal(ks[1], (H1, H2), jnp.float32)
    b2 = jnp.zeros((1, H2), jnp.float32)
    w3 = scale * jax.random.normal(ks[2], (H2, H3), jnp.float32)
    b3 = jnp.zeros((1, H3), jnp.float32)
    wp = scale * jax.random.normal(ks[3], (P_IN, P_H), jnp.float32)
    bp = jnp.zeros((1, P_H), jnp.float32)
    # fc_pol (64->4) split into frame half / pose half, matching torch.cat order.
    wpol = scale * jax.random.normal(ks[4], (H3 + P_H, A), jnp.float32)
    wpol_f, wpol_p = wpol[:H3, :], wpol[H3:, :]
    bpol = jnp.zeros((1, A), jnp.float32)
    return (w1, b1, w2, b2, w3, b3, wp, bp, wpol_f, wpol_p, bpol)


def prepare_params(params):
    """Offline preprocessing: cast weights to bf16 and zero-pad fc1/fc2 to
    lane-friendly sizes (K 1600->1792, H1 784->896). Biases stay f32."""
    (w1, b1, w2, b2, w3, b3, wp, bp, wpol_f, wpol_p, bpol) = params
    bf = jnp.bfloat16
    w1p = jnp.pad(w1.astype(bf), ((0, K_PAD - K_IN), (0, H1P - H1)))
    b1p = jnp.pad(b1, ((0, 0), (0, H1P - H1)))
    w2p = jnp.pad(w2.astype(bf), ((0, H1P - H1), (0, 0)))
    return (w1p, b1p, w2p, b2, w3.astype(bf), b3, wp.astype(bf), bp,
            wpol_f.astype(bf), wpol_p.astype(bf), bpol)


def reference_forward(frame, robot_pose, params):
    """Pure-JAX reference with the same bf16-weight / f32-accumulate numerics."""
    (w1, b1, w2, b2, w3, b3, wpol_f, wpol_p, bpol) = (
        params[0], params[1], params[2], params[3], params[4], params[5],
        params[8], params[9], params[10])
    wp, bp = params[6], params[7]
    bf = jnp.bfloat16
    B = frame.shape[0]
    x = frame.reshape(B, -1).astype(bf)
    rp = robot_pose.reshape(B, -1).astype(bf)

    def lin(a, w, b):
        return jnp.dot(a, w.astype(bf), preferred_element_type=jnp.float32) + b

    h = jax.nn.relu(lin(x, w1, b1)).astype(bf)
    h = jax.nn.relu(lin(h, w2, b2)).astype(bf)
    h = jax.nn.relu(lin(h, w3, b3)).astype(bf)
    p = jax.nn.relu(lin(rp, wp, bp)).astype(bf)
    logits = (jnp.dot(h, wpol_f.astype(bf), preferred_element_type=jnp.float32)
              + jnp.dot(p, wpol_p.astype(bf), preferred_element_type=jnp.float32)
              + bpol)
    return jax.nn.softmax(logits, axis=1)


if __name__ == "__main__":
    key = jax.random.PRNGKey(0)
    k_frame, k_pose, k_params = jax.random.split(key, 3)

    B = 2
    frame = jax.random.normal(k_frame, (B, 40, 40), jnp.float32)   # flattens to 1600
    robot_pose = jax.random.normal(k_pose, (B, 2), jnp.float32)

    params = make_params(k_params)
    prepared = prepare_params(params)

    out = network_policy_gradient_forward(frame, robot_pose, prepared)
    out = jax.block_until_ready(out)

    ref = jax.block_until_ready(reference_forward(frame, robot_pose, params))
    # bf16 weights -> slightly looser tolerance than the old f32 path.
    np.testing.assert_allclose(np.asarray(out), np.asarray(ref), rtol=1e-3, atol=1e-3)
    # rows must sum to 1 (softmax)
    np.testing.assert_allclose(np.asarray(out).sum(axis=1), np.ones(B),
                               rtol=1e-5, atol=1e-5)

    print("KERNEL_OK")
</pallas_src>

<mosaic_0001>
module attributes {stable_mosaic.version = 11 : i64} {
  func.func @policy_grad_kernel(%arg0: i32, %arg1: i32, %arg2: memref<8x256xbf16, #tpu.memory_space<vmem>>, %arg3: memref<8x2xbf16, #tpu.memory_space<vmem>>, %arg4: memref<256x896xbf16, #tpu.memory_space<vmem>>, %arg5: memref<1x896xf32, #tpu.memory_space<vmem>>, %arg6: memref<896x256xbf16, #tpu.memory_space<vmem>>, %arg7: memref<1x256xf32, #tpu.memory_space<vmem>>, %arg8: memref<256x32xbf16, #tpu.memory_space<vmem>>, %arg9: memref<1x32xf32, #tpu.memory_space<vmem>>, %arg10: memref<2x32xbf16, #tpu.memory_space<vmem>>, %arg11: memref<1x32xf32, #tpu.memory_space<vmem>>, %arg12: memref<32x4xbf16, #tpu.memory_space<vmem>>, %arg13: memref<32x4xbf16, #tpu.memory_space<vmem>>, %arg14: memref<1x4xf32, #tpu.memory_space<vmem>>, %arg15: memref<8x4xf32, #tpu.memory_space<vmem>>, %arg16: memref<8x896xf32, #tpu.memory_space<vmem>>) attributes {dimension_semantics = [#tpu.dimension_semantics<parallel>, #tpu.dimension_semantics<arbitrary>], iteration_bounds = array<i64: 1, 7>, scalar_prefetch = 0 : i64, scratch_operands = 1 : i64, tpu.core_type = #tpu.core_type<tc>, window_params = [{transform_indices = @transform_0, window_bounds = array<i64: 8, 256>}, {transform_indices = @transform_1, window_bounds = array<i64: 8, 2>}, {transform_indices = @transform_2, window_bounds = array<i64: 256, 896>}, {pipeline_mode = #tpu.pipeline_mode<synchronous>, transform_indices = @transform_3, window_bounds = array<i64: 1, 896>}, {pipeline_mode = #tpu.pipeline_mode<synchronous>, transform_indices = @transform_4, window_bounds = array<i64: 896, 256>}, {pipeline_mode = #tpu.pipeline_mode<synchronous>, transform_indices = @transform_5, window_bounds = array<i64: 1, 256>}, {pipeline_mode = #tpu.pipeline_mode<synchronous>, transform_indices = @transform_6, window_bounds = array<i64: 256, 32>}, {pipeline_mode = #tpu.pipeline_mode<synchronous>, transform_indices = @transform_7, window_bounds = array<i64: 1, 32>}, {pipeline_mode = #tpu.pipeline_mode<synchronous>, transform_indices = @transform_8, window_bounds = array<i64: 2, 32>}, {pipeline_mode = #tpu.pipeline_mode<synchronous>, transform_indices = @transform_9, window_bounds = array<i64: 1, 32>}, {pipeline_mode = #tpu.pipeline_mode<synchronous>, transform_indices = @transform_10, window_bounds = array<i64: 32, 4>}, {pipeline_mode = #tpu.pipeline_mode<synchronous>, transform_indices = @transform_11, window_bounds = array<i64: 32, 4>}, {pipeline_mode = #tpu.pipeline_mode<synchronous>, transform_indices = @transform_12, window_bounds = array<i64: 1, 4>}, {transform_indices = @transform_13, window_bounds = array<i64: 8, 4>}]} {
    %c0_i32 = arith.constant 0 : i32
    %0 = arith.cmpi eq, %arg1, %c0_i32 : i32
    %1 = arith.extui %0 : i1 to i32
    %c0_i32_0 = arith.constant 0 : i32
    %2 = arith.cmpi ne, %1, %c0_i32_0 : i32
    scf.if %2 {
      %c0_9 = arith.constant 0 : index
      %c0_10 = arith.constant 0 : index
      %12 = vector.load %arg5[%c0_9, %c0_10] : memref<1x896xf32, #tpu.memory_space<vmem>>, vector<1x896xf32>
      %13 = vector.shape_cast %12 : vector<1x896xf32> to vector<1x896xf32>
      %14 = vector.broadcast %13 : vector<1x896xf32> to vector<8x896xf32>
      %c0_11 = arith.constant 0 : index
      %c0_12 = arith.constant 0 : index
      %15 = vector.load %arg16[%c0_11, %c0_12] : memref<8x896xf32, #tpu.memory_space<vmem>>, vector<8x896xf32>
      tpu.vector_store %arg16[%c0_11, %c0_12], %14 {strides = array<i32>} : memref<8x896xf32, #tpu.memory_space<vmem>>, vector<8x896xf32>,
    } else {
    }
    %c0 = arith.constant 0 : index
    %c0_1 = arith.constant 0 : index
    %3 = vector.load %arg16[%c0, %c0_1] : memref<8x896xf32, #tpu.memory_space<vmem>>, vector<8x896xf32>
    %c0_2 = arith.constant 0 : index
    %c0_3 = arith.constant 0 : index
    %4 = vector.load %arg2[%c0_2, %c0_3] : memref<8x256xbf16, #tpu.memory_space<vmem>>, vector<8x256xbf16>
    %c0_4 = arith.constant 0 : index
    %c0_5 = arith.constant 0 : index
    %5 = vector.load %arg4[%c0_4, %c0_5] : memref<256x896xbf16, #tpu.memory_space<vmem>>, vector<256x896xbf16>
    %cst = arith.constant dense<0.000000e+00> : vector<8x896xf32>
    %6 = tpu.matmul %4, %5, %cst {dimension_numbers = #tpu.dot_dimension_numbers<[1], [0], [0], [1], [0, 0, 1, 1], [], []>} : vector<8x256xbf16>, vector<256x896xbf16>, vector<8x896xf32> -> vector<8x896xf32>
    %7 = arith.addf %3, %6 : vector<8x896xf32>
    %c0_6 = arith.constant 0 : index
    %c0_7 = arith.constant 0 : index
    %8 = vector.load %arg16[%c0_6, %c0_7] : memref<8x896xf32, #tpu.memory_space<vmem>>, vector<8x896xf32>
    tpu.vector_store %arg16[%c0_6, %c0_7], %7 {strides = array<i32>} : memref<8x896xf32, #tpu.memory_space<vmem>>, vector<8x896xf32>,
    %c6_i32 = arith.constant 6 : i32
    %9 = arith.cmpi eq, %arg1, %c6_i32 : i32
    %10 = arith.extui %9 : i1 to i32
    %c0_i32_8 = arith.constant 0 : i32
    %11 = arith.cmpi ne, %10, %c0_i32_8 : i32
    scf.if %11 {
      %c0_9 = arith.constant 0 : index
      %c0_10 = arith.constant 0 : index
      %12 = vector.load %arg16[%c0_9, %c0_10] : memref<8x896xf32, #tpu.memory_space<vmem>>, vector<8x896xf32>
      %cst_11 = arith.constant 0.000000e+00 : f32
      %13 = vector.broadcast %cst_11 : f32 to vector<8x896xf32>
      %14 = arith.maximumf %12, %13 : vector<8x896xf32>
      %15 = arith.truncf %14 : vector<8x896xf32> to vector<8x896xbf16>
      %c0_12 = arith.constant 0 : index
      %c0_13 = arith.constant 0 : index
      %16 = vector.load %arg6[%c0_12, %c0_13] : memref<896x256xbf16, #tpu.memory_space<vmem>>, vector<896x256xbf16>
      %cst_14 = arith.constant dense<0.000000e+00> : vector<8x256xf32>
      %17 = tpu.matmul %15, %16, %cst_14 {dimension_numbers = #tpu.dot_dimension_numbers<[1], [0], [0], [1], [0, 0, 1, 1], [], []>} : vector<8x896xbf16>, vector<896x256xbf16>, vector<8x256xf32> -> vector<8x256xf32>
      %c0_15 = arith.constant 0 : index
      %c0_16 = arith.constant 0 : index
      %18 = vector.load %arg7[%c0_15, %c0_16] : memref<1x256xf32, #tpu.memory_space<vmem>>, vector<1x256xf32>
      %19 = vector.broadcast %18 : vector<1x256xf32> to vector<8x256xf32>
      %20 = arith.addf %17, %19 : vector<8x256xf32>
      %cst_17 = arith.constant 0.000000e+00 : f32
      %21 = vector.broadcast %cst_17 : f32 to vector<8x256xf32>
      %22 = arith.maximumf %20, %21 : vector<8x256xf32>
      %23 = arith.truncf %22 : vector<8x256xf32> to vector<8x256xbf16>
      %c0_18 = arith.constant 0 : index
      %c0_19 = arith.constant 0 : index
      %24 = vector.load %arg8[%c0_18, %c0_19] : memref<256x32xbf16, #tpu.memory_space<vmem>>, vector<256x32xbf16>
      %cst_20 = arith.constant dense<0.000000e+00> : vector<8x32xf32>
      %25 = tpu.matmul %23, %24, %cst_20 {dimension_numbers = #tpu.dot_dimension_numbers<[1], [0], [0], [1], [0, 0, 1, 1], [], []>} : vector<8x256xbf16>, vector<256x32xbf16>, vector<8x32xf32> -> vector<8x32xf32>
      %c0_21 = arith.constant 0 : index
      %c0_22 = arith.constant 0 : index
      %26 = vector.load %arg9[%c0_21, %c0_22] : memref<1x32xf32, #tpu.memory_space<vmem>>, vector<1x32xf32>
      %27 = vector.broadcast %26 : vector<1x32xf32> to vector<8x32xf32>
      %28 = arith.addf %25, %27 : vector<8x32xf32>
      %cst_23 = arith.constant 0.000000e+00 : f32
      %29 = vector.broadcast %cst_23 : f32 to vector<8x32xf32>
      %30 = arith.maximumf %28, %29 : vector<8x32xf32>
      %31 = arith.truncf %30 : vector<8x32xf32> to vector<8x32xbf16>
      %c0_24 = arith.constant 0 : index
      %c0_25 = arith.constant 0 : index
      %32 = vector.load %arg3[%c0_24, %c0_25] : memref<8x2xbf16, #tpu.memory_space<vmem>>, vector<8x2xbf16>
      %c0_26 = arith.constant 0 : index
      %c0_27 = arith.constant 0 : index
      %33 = vector.load %arg10[%c0_26, %c0_27] : memref<2x32xbf16, #tpu.memory_space<vmem>>, vector<2x32xbf16>
      %cst_28 = arith.constant dense<0.000000e+00> : vector<8x32xf32>
      %34 = tpu.matmul %32, %33, %cst_28 {dimension_numbers = #tpu.dot_dimension_numbers<[1], [0], [0], [1], [0, 0, 1, 1], [], []>} : vector<8x2xbf16>, vector<2x32xbf16>, vector<8x32xf32> -> vector<8x32xf32>
      %c0_29 = arith.constant 0 : index
      %c0_30 = arith.constant 0 : index
      %35 = vector.load %arg11[%c0_29, %c0_30] : memref<1x32xf32, #tpu.memory_space<vmem>>, vector<1x32xf32>
      %36 = vector.broadcast %35 : vector<1x32xf32> to vector<8x32xf32>
      %37 = arith.addf %34, %36 : vector<8x32xf32>
      %cst_31 = arith.constant 0.000000e+00 : f32
      %38 = vector.broadcast %cst_31 : f32 to vector<8x32xf32>
      %39 = arith.maximumf %37, %38 : vector<8x32xf32>
      %40 = arith.truncf %39 : vector<8x32xf32> to vector<8x32xbf16>
      %c0_32 = arith.constant 0 : index
      %c0_33 = arith.constant 0 : index
      %41 = vector.load %arg12[%c0_32, %c0_33] : memref<32x4xbf16, #tpu.memory_space<vmem>>, vector<32x4xbf16>
      %cst_34 = arith.constant dense<0.000000e+00> : vector<8x4xf32>
      %42 = tpu.matmul %31, %41, %cst_34 {dimension_numbers = #tpu.dot_dimension_numbers<[1], [0], [0], [1], [0, 0, 1, 1], [], []>} : vector<8x32xbf16>, vector<32x4xbf16>, vector<8x4xf32> -> vector<8x4xf32>
      %c0_35 = arith.constant 0 : index
      %c0_36 = arith.constant 0 : index
      %43 = vector.load %arg13[%c0_35, %c0_36] : memref<32x4xbf16, #tpu.memory_space<vmem>>, vector<32x4xbf16>
      %cst_37 = arith.constant dense<0.000000e+00> : vector<8x4xf32>
      %44 = tpu.matmul %40, %43, %cst_37 {dimension_numbers = #tpu.dot_dimension_numbers<[1], [0], [0], [1], [0, 0, 1, 1], [], []>} : vector<8x32xbf16>, vector<32x4xbf16>, vector<8x4xf32> -> vector<8x4xf32>
      %45 = arith.addf %42, %44 : vector<8x4xf32>
      %c0_38 = arith.constant 0 : index
      %c0_39 = arith.constant 0 : index
      %46 = vector.load %arg14[%c0_38, %c0_39] : memref<1x4xf32, #tpu.memory_space<vmem>>, vector<1x4xf32>
      %47 = vector.broadcast %46 : vector<1x4xf32> to vector<8x4xf32>
      %48 = arith.addf %45, %47 : vector<8x4xf32>
      %cst_40 = arith.constant dense<0xFF800000> : vector<8xf32>
      %49 = vector.multi_reduction <maximumf>, %48, %cst_40 [1] : vector<8x4xf32> to vector<8xf32>
      %50 = vector.shape_cast %49 : vector<8xf32> to vector<8x1xf32>
      %51 = vector.broadcast %50 : vector<8x1xf32> to vector<8x4xf32>
      %52 = arith.subf %48, %51 : vector<8x4xf32>
      %53 = math.exp %52 : vector<8x4xf32>
      %cst_41 = arith.constant dense<0.000000e+00> : vector<8xf32>
      %54 = vector.multi_reduction <add>, %53, %cst_41 [1] : vector<8x4xf32> to vector<8xf32>
      %55 = vector.shape_cast %54 : vector<8xf32> to vector<8x1xf32>
      %56 = vector.broadcast %55 : vector<8x1xf32> to vector<8x4xf32>
      %57 = arith.divf %53, %56 : vector<8x4xf32>
      %c0_42 = arith.constant 0 : index
      %c0_43 = arith.constant 0 : index
      %58 = vector.load %arg15[%c0_42, %c0_43] : memref<8x4xf32, #tpu.memory_space<vmem>>, vector<8x4xf32>
      tpu.vector_store %arg15[%c0_42, %c0_43], %57 {strides = array<i32>} : memref<8x4xf32, #tpu.memory_space<vmem>>, vector<8x4xf32>,
    } else {
    }
    return
  }
  func.func @transform_0(%arg0: i32, %arg1: i32) -> (i32, i32) {
    %c0_i32 = arith.constant 0 : i32
    return %arg0, %arg1 : i32, i32
  }
  func.func @transform_1(%arg0: i32, %arg1: i32) -> (i32, i32) {
    %c0_i32 = arith.constant 0 : i32
    %c0_i32_0 = arith.constant 0 : i32
    return %arg0, %c0_i32 : i32, i32
  }
  func.func @transform_2(%arg0: i32, %arg1: i32) -> (i32, i32) {
    %c0_i32 = arith.constant 0 : i32
    %c0_i32_0 = arith.constant 0 : i32
    return %arg1, %c0_i32 : i32, i32
  }
  func.func @transform_3(%arg0: i32, %arg1: i32) -> (i32, i32) {
    %c0_i32 = arith.constant 0 : i32
    %c0_i32_0 = arith.constant 0 : i32
    %c0_i32_1 = arith.constant 0 : i32
    return %c0_i32, %c0_i32_0 : i32, i32
  }
  func.func @transform_4(%arg0: i32, %arg1: i32) -> (i32, i32) {
    %c0_i32 = arith.constant 0 : i32
    %c0_i32_0 = arith.constant 0 : i32
    %c0_i32_1 = arith.constant 0 : i32
    return %c0_i32, %c0_i32_0 : i32, i32
  }
  func.func @transform_5(%arg0: i32, %arg1: i32) -> (i32, i32) {
    %c0_i32 = arith.constant 0 : i32
    %c0_i32_0 = arith.constant 0 : i32
    %c0_i32_1 = arith.constant 0 : i32
    return %c0_i32, %c0_i32_0 : i32, i32
  }
  func.func @transform_6(%arg0: i32, %arg1: i32) -> (i32, i32) {
    %c0_i32 = arith.constant 0 : i32
    %c0_i32_0 = arith.constant 0 : i32
    %c0_i32_1 = arith.constant 0 : i32
    return %c0_i32, %c0_i32_0 : i32, i32
  }
  func.func @transform_7(%arg0: i32, %arg1: i32) -> (i32, i32) {
    %c0_i32 = arith.constant 0 : i32
    %c0_i32_0 = arith.constant 0 : i32
    %c0_i32_1 = arith.constant 0 : i32
    return %c0_i32, %c0_i32_0 : i32, i32
  }
  func.func @transform_8(%arg0: i32, %arg1: i32) -> (i32, i32) {
    %c0_i32 = arith.constant 0 : i32
    %c0_i32_0 = arith.constant 0 : i32
    %c0_i32_1 = arith.constant 0 : i32
    return %c0_i32, %c0_i32_0 : i32, i32
  }
  func.func @transform_9(%arg0: i32, %arg1: i32) -> (i32, i32) {
    %c0_i32 = arith.constant 0 : i32
    %c0_i32_0 = arith.constant 0 : i32
    %c0_i32_1 = arith.constant 0 : i32
    return %c0_i32, %c0_i32_0 : i32, i32
  }
  func.func @transform_10(%arg0: i32, %arg1: i32) -> (i32, i32) {
    %c0_i32 = arith.constant 0 : i32
    %c0_i32_0 = arith.constant 0 : i32
    %c0_i32_1 = arith.constant 0 : i32
    return %c0_i32, %c0_i32_0 : i32, i32
  }
  func.func @transform_11(%arg0: i32, %arg1: i32) -> (i32, i32) {
    %c0_i32 = arith.constant 0 : i32
    %c0_i32_0 = arith.constant 0 : i32
    %c0_i32_1 = arith.constant 0 : i32
    return %c0_i32, %c0_i32_0 : i32, i32
  }
  func.func @transform_12(%arg0: i32, %arg1: i32) -> (i32, i32) {
    %c0_i32 = arith.constant 0 : i32
    %c0_i32_0 = arith.constant 0 : i32
    %c0_i32_1 = arith.constant 0 : i32
    return %c0_i32, %c0_i32_0 : i32, i32
  }
  func.func @transform_13(%arg0: i32, %arg1: i32) -> (i32, i32) {
    %c0_i32 = arith.constant 0 : i32
    %c0_i32_0 = arith.constant 0 : i32
    return %arg0, %c0_i32 : i32, i32
  }
}

</mosaic_0001>

<llo_original>
// kernel: tpu_custom_call.1
$region0: #{tpu_custom_call.1}
  #allocation0 [shape = 'u32[]', space=smem, size = 0x4, offset = 0x4, fixed_abs, tag = 'smem constant byte address 0x4 - core index']
  #allocation1 [shape = 'u32[144,128]{1,0:T(1,128)}', space=vmem, size = 0x12000, scoped, tag = 'internal scratch']
  #allocation2 [shape = 'f32[8,896]{1,0:T(8,128)}', space=vmem, size = 0x7000, scoped, tag = 'scratch operand']
  %s0 = inlined_call_operand.hbm [shape: bf16[8,1792], index: 0, kind: input, shape index: {}]
  %s1 = inlined_call_operand.vmem [shape: bf16[8,2], index: 1, kind: input, shape index: {}]
  %s2 = inlined_call_operand.hbm [shape: bf16[1792,896], index: 2, kind: input, shape index: {}]
  %s3 = inlined_call_operand.hbm [shape: f32[1,896], index: 3, kind: input, shape index: {}]
  %s4 = inlined_call_operand.hbm [shape: bf16[896,256], index: 4, kind: input, shape index: {}]
  %s5 = inlined_call_operand.hbm [shape: f32[1,256], index: 5, kind: input, shape index: {}]
  %s6 = inlined_call_operand.vmem [shape: bf16[256,32], index: 6, kind: input, shape index: {}]
  %s7 = inlined_call_operand.hbm [shape: f32[1,32], index: 7, kind: input, shape index: {}]
  %s8 = inlined_call_operand.hbm [shape: bf16[2,32], index: 8, kind: input, shape index: {}]
  %s9 = inlined_call_operand.hbm [shape: f32[1,32], index: 9, kind: input, shape index: {}]
  %s10 = inlined_call_operand.vmem [shape: bf16[32,4], index: 10, kind: input, shape index: {}]
  %s11 = inlined_call_operand.vmem [shape: bf16[32,4], index: 11, kind: input, shape index: {}]
  %s12 = inlined_call_operand.hbm [shape: f32[1,4], index: 12, kind: input, shape index: {}]
  %s13 = inlined_call_operand.vmem [shape: f32[8,4], index: 13, kind: output, shape index: {}]
  %s14 = sld [smem:[#allocation0]]
  $region129: #{tpu_custom_call.1} parent=0
    _
  %s16 = ssub.s32 1, %s14
  %s17 = scalar_select 0, %s16, %s14
  $region1: #{tpu_custom_call.1} parent=0
    #allocation3 [shape = 'u8[8192]{0}', space=vmem, size = 0x2000, scoped, tag = 'input window, operand 0']
    #allocation4 [shape = 's32[2]{0}', space=sflag, size = 0x8, scoped, tag = 'scoped memory for tpu_custom_call.1']
    #allocation5 [shape = 'u8[917504]{0}', space=vmem, size = 0xe0000, scoped, tag = 'input window, operand 2']
    #allocation6 [shape = 's32[2]{0}', space=sflag, size = 0x8, scoped, tag = 'scoped memory for tpu_custom_call.1']
    #allocation7 [shape = 'u8[3584]{0}', space=vmem, size = 0x1000, scoped, tag = 'input window, operand 3, single buffered']
    #allocation8 [shape = 'u8[458752]{0}', space=vmem, size = 0x70000, scoped, tag = 'input window, operand 4, single buffered']
    #allocation9 [shape = 's32[1]{0}', space=sflag, size = 0x4, scoped, tag = 'scoped memory for tpu_custom_call.1']
    #allocation10 [shape = 'u8[1024]{0}', space=vmem, size = 0x400, scoped, tag = 'input window, operand 5, single buffered']
    #allocation11 [shape = 'u8[512]{0}', space=vmem, size = 0x400, scoped, tag = 'input window, operand 7, single buffered']
    #allocation12 [shape = 's32[1]{0}', space=sflag, size = 0x4, scoped, tag = 'scoped memory for tpu_custom_call.1']
    #allocation13 [shape = 'u8[512]{0}', space=vmem, size = 0x400, scoped, tag = 'input window, operand 8, single buffered']
    #allocation14 [shape = 'u8[512]{0}', space=vmem, size = 0x400, scoped, tag = 'input window, operand 9, single buffered']
    #allocation15 [shape = 's32[1]{0}', space=sflag, size = 0x4, scoped, tag = 'scoped memory for tpu_custom_call.1']
    #allocation16 [shape = 'u8[512]{0}', space=vmem, size = 0x400, scoped, tag = 'input window, operand 12, single buffered']
    %18 = vsyncpa [#allocation4], 0
    %s19 = scalar_lea.sflag [#allocation4], 1
    %20 = vsyncpa %s19, 0
    %21 = vsyncpa [#allocation6], 0
    %s22 = scalar_lea.sflag [#allocation6], 1
    %23 = vsyncpa %s22, 0
    %24 = vsyncpa [#allocation9], 0
    %25 = vsyncpa [#allocation12], 0
    %26 = vsyncpa [#allocation15], 0
    loop: start=0, step=1, limit=9
    $region2: #{tpu_custom_call.1} parent=1 // loop_pre_header
      _
    $region3: #{tpu_custom_call.1} parent=1 // loop_header
      %s28 = sphi 0, %s32
      %p29 = scmp.ge.s32.totalorder %s28, 9
      %s35 = sphi 0, %s47
      %s36 = sphi 0, %s43
      %s37 = sphi 0, %s35
      %s38 = sphi 0, %s36
      %s39 = sphi 0, %s37
      %s40 = sphi 0, %s38
      %s52 = sphi 0, %s54
      %s55 = sphi 0, %s52
      %s56 = sphi 0, %s55
      %s72 = sphi 0, %s56
      %s78 = sphi 0, %s80
      %s81 = sphi 0, %s78
      %s82 = sphi 0, %s81
      %s98 = sphi 0, %s82
      %s104 = sphi 0, %s106
      %s107 = sphi 0, %s104
      %s108 = sphi 0, %s107
      %s124 = sphi 0, %s108
      %s128 = sphi 0, %s128
      %s130 = sphi 0, %s128
      %s131 = sphi 0, %s130
      %s145 = sphi 0, %s131
      %s149 = sphi 0, %s149
      %s151 = sphi 0, %s149
      %s152 = sphi 0, %s151
      %s166 = sphi 0, %s152
      %s170 = sphi 0, %s170
      %s172 = sphi 0, %s170
      %s173 = sphi 0, %s172
      %s187 = sphi 0, %s173
      %s191 = sphi 0, %s191
      %s193 = sphi 0, %s191
      %s194 = sphi 0, %s193
      %s208 = sphi 0, %s194
      %s212 = sphi 0, %s212
      %s214 = sphi 0, %s212
      %s215 = sphi 0, %s214
      %s229 = sphi 0, %s215
      %s233 = sphi 0, %s233
      %s235 = sphi 0, %s233
      %s236 = sphi 0, %s235
      %s250 = sphi 0, %s236
      %s254 = sphi 0, %s254
      %s256 = sphi 0, %s254
      %s257 = sphi 0, %s256
      %s271 = sphi 0, %s257
      %s275 = sphi 0, %s275
      %s277 = sphi 0, %s275
      %s278 = sphi 0, %s277
      %s292 = sphi 0, %s278
      %s296 = sphi 0, %s296
      %s298 = sphi 0, %s296
      %s299 = sphi 0, %s298
      %s313 = sphi 0, %s299
      %s317 = sphi 0, %s317
      %s319 = sphi 0, %s317
      %s320 = sphi 0, %s319
      %s334 = sphi 0, %s320
      %s340 = sphi 0, %s342
      %s343 = sphi 0, %s340
      %s344 = sphi 0, %s343
      %s360 = sphi 0, %s344
    $region4: #{tpu_custom_call.1} parent=1 // loop_header_branch
      %31 = sbr.rel (%p29) target = $region8
    $region5: #{tpu_custom_call.1} parent=1 // loop_body
      %s33 = ssub.s32 %s28, 1
      %s34 = ssub.s32 %s28, 2
      %s41 = sadd.s32 1, %s36
      %p42 = scmp.ge.s32.totalorder %s41, 7
      %s43 = scalar_select %p42, 0, %s41
      %s44 = sadd.s32 1, %s35
      %s45 = scalar_select %p42, %s44, %s35
      %p46 = scmp.ge.s32.totalorder %s45, 1
      %s47 = scalar_select %p46, 0, %s45
      %s48 = ssub.s32 %s35, %s47
      %s49 = ssub.s32 %s36, %s43
      %s50 = sor.u32 %s48, %s49
      %p51 = scmp.eq.s32.totalorder %s50, 0
      %s53 = sadd.s32 %s52, 1
      %s54 = scalar_select %p51, %s52, %s53
      %p57 = pneg %p51
      %p58 = scmp.eq.s32.totalorder %s28, 6
      %p59 = por %p57, %p58
      %p60 = scmp.ne.s32.totalorder %s52, %s55
      %p61 = scmp.eq.s32.totalorder %s28, 0
      %p62 = por %p60, %p61
      %p63 = scmp.ne.s32.totalorder %s52, %s55
      %p64 = scmp.eq.s32.totalorder %s33, 6
      %p65 = por %p63, %p64
      %p66 = scmp.ne.s32.totalorder %s55, %s56
      %p67 = scmp.eq.s32.totalorder %s33, 0
      %p68 = por %p66, %p67
      %p69 = scmp.ne.s32.totalorder %s55, %s56
      %p70 = scmp.eq.s32.totalorder %s34, 6
      %p71 = por %p69, %p70
      %p73 = scmp.ne.s32.totalorder %s56, %s72
      %p74 = scmp.eq.s32.totalorder %s34, 0
      %p75 = por %p73, %p74
      %s76 = ssub.s32 %s35, %s47
      %p77 = scmp.eq.s32.totalorder %s76, 0
      %s79 = sadd.s32 %s78, 1
      %s80 = scalar_select %p77, %s78, %s79
      %p83 = pneg %p77
      %p84 = scmp.eq.s32.totalorder %s28, 6
      %p85 = por %p83, %p84
      %p86 = scmp.ne.s32.totalorder %s78, %s81
      %p87 = scmp.eq.s32.totalorder %s28, 0
      %p88 = por %p86, %p87
      %p89 = scmp.ne.s32.totalorder %s78, %s81
      %p90 = scmp.eq.s32.totalorder %s33, 6
      %p91 = por %p89, %p90
      %p92 = scmp.ne.s32.totalorder %s81, %s82
      %p93 = scmp.eq.s32.totalorder %s33, 0
      %p94 = por %p92, %p93
      %p95 = scmp.ne.s32.totalorder %s81, %s82
      %p96 = scmp.eq.s32.totalorder %s34, 6
      %p97 = por %p95, %p96
      %p99 = scmp.ne.s32.totalorder %s82, %s98
      %p100 = scmp.eq.s32.totalorder %s34, 0
      %p101 = por %p99, %p100
      %s102 = ssub.s32 %s36, %s43
      %p103 = scmp.eq.s32.totalorder %s102, 0
      %s105 = sadd.s32 %s104, 1
      %s106 = scalar_select %p103, %s104, %s105
      %p109 = pneg %p103
      %p110 = scmp.eq.s32.totalorder %s28, 6
      %p111 = por %p109, %p110
      %p112 = scmp.ne.s32.totalorder %s104, %s107
      %p113 = scmp.eq.s32.totalorder %s28, 0
      %p114 = por %p112, %p113
      %p115 = scmp.ne.s32.totalorder %s104, %s107
      %p116 = scmp.eq.s32.totalorder %s33, 6
      %p117 = por %p115, %p116
      %p118 = scmp.ne.s32.totalorder %s107, %s108
      %p119 = scmp.eq.s32.totalorder %s33, 0
      %p120 = por %p118, %p119
      %p121 = scmp.ne.s32.totalorder %s107, %s108
      %p122 = scmp.eq.s32.totalorder %s34, 6
      %p123 = por %p121, %p122
      %p125 = scmp.ne.s32.totalorder %s108, %s124
      %p126 = scmp.eq.s32.totalorder %s34, 0
      %p127 = por %p125, %p126
      %s129 = sadd.s32 %s128, 1
      %p132 = scmp.eq.s32.totalorder %s28, 6
      %p133 = scmp.ne.s32.totalorder %s128, %s130
      %p134 = scmp.eq.s32.totalorder %s28, 0
      %p135 = por %p133, %p134
      %p136 = scmp.ne.s32.totalorder %s128, %s130
      %p137 = scmp.eq.s32.totalorder %s33, 6
      %p138 = por %p136, %p137
      %p139 = scmp.ne.s32.totalorder %s130, %s131
      %p140 = scmp.eq.s32.totalorder %s33, 0
      %p141 = por %p139, %p140
      %p142 = scmp.ne.s32.totalorder %s130, %s131
      %p143 = scmp.eq.s32.totalorder %s34, 6
      %p144 = por %p142, %p143
      %p146 = scmp.ne.s32.totalorder %s131, %s145
      %p147 = scmp.eq.s32.totalorder %s34, 0
      %p148 = por %p146, %p147
      %s150 = sadd.s32 %s149, 1
      %p153 = scmp.eq.s32.totalorder %s28, 6
      %p154 = scmp.ne.s32.totalorder %s149, %s151
      %p155 = scmp.eq.s32.totalorder %s28, 0
      %p156 = por %p154, %p155
      %p157 = scmp.ne.s32.totalorder %s149, %s151
      %p158 = scmp.eq.s32.totalorder %s33, 6
      %p159 = por %p157, %p158
      %p160 = scmp.ne.s32.totalorder %s151, %s152
      %p161 = scmp.eq.s32.totalorder %s33, 0
      %p162 = por %p160, %p161
      %p163 = scmp.ne.s32.totalorder %s151, %s152
      %p164 = scmp.eq.s32.totalorder %s34, 6
      %p165 = por %p163, %p164
      %p167 = scmp.ne.s32.totalorder %s152, %s166
      %p168 = scmp.eq.s32.totalorder %s34, 0
      %p169 = por %p167, %p168
      %s171 = sadd.s32 %s170, 1
      %p174 = scmp.eq.s32.totalorder %s28, 6
      %p175 = scmp.ne.s32.totalorder %s170, %s172
      %p176 = scmp.eq.s32.totalorder %s28, 0
      %p177 = por %p175, %p176
      %p178 = scmp.ne.s32.totalorder %s170, %s172
      %p179 = scmp.eq.s32.totalorder %s33, 6
      %p180 = por %p178, %p179
      %p181 = scmp.ne.s32.totalorder %s172, %s173
      %p182 = scmp.eq.s32.totalorder %s33, 0
      %p183 = por %p181, %p182
      %p184 = scmp.ne.s32.totalorder %s172, %s173
      %p185 = scmp.eq.s32.totalorder %s34, 6
      %p186 = por %p184, %p185
      %p188 = scmp.ne.s32.totalorder %s173, %s187
      %p189 = scmp.eq.s32.totalorder %s34, 0
      %p190 = por %p188, %p189
      %s192 = sadd.s32 %s191, 1
      %p195 = scmp.eq.s32.totalorder %s28, 6
      %p196 = scmp.ne.s32.totalorder %s191, %s193
      %p197 = scmp.eq.s32.totalorder %s28, 0
      %p198 = por %p196, %p197
      %p199 = scmp.ne.s32.totalorder %s191, %s193
      %p200 = scmp.eq.s32.totalorder %s33, 6
      %p201 = por %p199, %p200
      %p202 = scmp.ne.s32.totalorder %s193, %s194
      %p203 = scmp.eq.s32.totalorder %s33, 0
      %p204 = por %p202, %p203
      %p205 = scmp.ne.s32.totalorder %s193, %s194
      %p206 = scmp.eq.s32.totalorder %s34, 6
      %p207 = por %p205, %p206
      %p209 = scmp.ne.s32.totalorder %s194, %s208
      %p210 = scmp.eq.s32.totalorder %s34, 0
      %p211 = por %p209, %p210
      %s213 = sadd.s32 %s212, 1
      %p216 = scmp.eq.s32.totalorder %s28, 6
      %p217 = scmp.ne.s32.totalorder %s212, %s214
      %p218 = scmp.eq.s32.totalorder %s28, 0
      %p219 = por %p217, %p218
      %p220 = scmp.ne.s32.totalorder %s212, %s214
      %p221 = scmp.eq.s32.totalorder %s33, 6
      %p222 = por %p220, %p221
      %p223 = scmp.ne.s32.totalorder %s214, %s215
      %p224 = scmp.eq.s32.totalorder %s33, 0
      %p225 = por %p223, %p224
      %p226 = scmp.ne.s32.totalorder %s214, %s215
      %p227 = scmp.eq.s32.totalorder %s34, 6
      %p228 = por %p226, %p227
      %p230 = scmp.ne.s32.totalorder %s215, %s229
      %p231 = scmp.eq.s32.totalorder %s34, 0
      %p232 = por %p230, %p231
      %s234 = sadd.s32 %s233, 1
      %p237 = scmp.eq.s32.totalorder %s28, 6
      %p238 = scmp.ne.s32.totalorder %s233, %s235
      %p239 = scmp.eq.s32.totalorder %s28, 0
      %p240 = por %p238, %p239
      %p241 = scmp.ne.s32.totalorder %s233, %s235
      %p242 = scmp.eq.s32.totalorder %s33, 6
      %p243 = por %p241, %p242
      %p244 = scmp.ne.s32.totalorder %s235, %s236
      %p245 = scmp.eq.s32.totalorder %s33, 0
      %p246 = por %p244, %p245
      %p247 = scmp.ne.s32.totalorder %s235, %s236
      %p248 = scmp.eq.s32.totalorder %s34, 6
      %p249 = por %p247, %p248
      %p251 = scmp.ne.s32.totalorder %s236, %s250
      %p252 = scmp.eq.s32.totalorder %s34, 0
      %p253 = por %p251, %p252
      %s255 = sadd.s32 %s254, 1
      %p258 = scmp.eq.s32.totalorder %s28, 6
      %p259 = scmp.ne.s32.totalorder %s254, %s256
      %p260 = scmp.eq.s32.totalorder %s28, 0
      %p261 = por %p259, %p260
      %p262 = scmp.ne.s32.totalorder %s254, %s256
      %p263 = scmp.eq.s32.totalorder %s33, 6
      %p264 = por %p262, %p263
      %p265 = scmp.ne.s32.totalorder %s256, %s257
      %p266 = scmp.eq.s32.totalorder %s33, 0
      %p267 = por %p265, %p266
      %p268 = scmp.ne.s32.totalorder %s256, %s257
      %p269 = scmp.eq.s32.totalorder %s34, 6
      %p270 = por %p268, %p269
      %p272 = scmp.ne.s32.totalorder %s257, %s271
      %p273 = scmp.eq.s32.totalorder %s34, 0
      %p274 = por %p272, %p273
      %s276 = sadd.s32 %s275, 1
      %p279 = scmp.eq.s32.totalorder %s28, 6
      %p280 = scmp.ne.s32.totalorder %s275, %s277
      %p281 = scmp.eq.s32.totalorder %s28, 0
      %p282 = por %p280, %p281
      %p283 = scmp.ne.s32.totalorder %s275, %s277
      %p284 = scmp.eq.s32.totalorder %s33, 6
      %p285 = por %p283, %p284
      %p286 = scmp.ne.s32.totalorder %s277, %s278
      %p287 = scmp.eq.s32.totalorder %s33, 0
      %p288 = por %p286, %p287
      %p289 = scmp.ne.s32.totalorder %s277, %s278
      %p290 = scmp.eq.s32.totalorder %s34, 6
      %p291 = por %p289, %p290
      %p293 = scmp.ne.s32.totalorder %s278, %s292
      %p294 = scmp.eq.s32.totalorder %s34, 0
      %p295 = por %p293, %p294
      %s297 = sadd.s32 %s296, 1
      %p300 = scmp.eq.s32.totalorder %s28, 6
      %p301 = scmp.ne.s32.totalorder %s296, %s298
      %p302 = scmp.eq.s32.totalorder %s28, 0
      %p303 = por %p301, %p302
      %p304 = scmp.ne.s32.totalorder %s296, %s298
      %p305 = scmp.eq.s32.totalorder %s33, 6
      %p306 = por %p304, %p305
      %p307 = scmp.ne.s32.totalorder %s298, %s299
      %p308 = scmp.eq.s32.totalorder %s33, 0
      %p309 = por %p307, %p308
      %p310 = scmp.ne.s32.totalorder %s298, %s299
      %p311 = scmp.eq.s32.totalorder %s34, 6
      %p312 = por %p310, %p311
      %p314 = scmp.ne.s32.totalorder %s299, %s313
      %p315 = scmp.eq.s32.totalorder %s34, 0
      %p316 = por %p314, %p315
      %s318 = sadd.s32 %s317, 1
      %p321 = scmp.eq.s32.totalorder %s28, 6
      %p322 = scmp.ne.s32.totalorder %s317, %s319
      %p323 = scmp.eq.s32.totalorder %s28, 0
      %p324 = por %p322, %p323
      %p325 = scmp.ne.s32.totalorder %s317, %s319
      %p326 = scmp.eq.s32.totalorder %s33, 6
      %p327 = por %p325, %p326
      %p328 = scmp.ne.s32.totalorder %s319, %s320
      %p329 = scmp.eq.s32.totalorder %s33, 0
      %p330 = por %p328, %p329
      %p331 = scmp.ne.s32.totalorder %s319, %s320
      %p332 = scmp.eq.s32.totalorder %s34, 6
      %p333 = por %p331, %p332
      %p335 = scmp.ne.s32.totalorder %s320, %s334
      %p336 = scmp.eq.s32.totalorder %s34, 0
      %p337 = por %p335, %p336
      %s338 = ssub.s32 %s35, %s47
      %p339 = scmp.eq.s32.totalorder %s338, 0
      %s341 = sadd.s32 %s340, 1
      %s342 = scalar_select %p339, %s340, %s341
      %p345 = pneg %p339
      %p346 = scmp.eq.s32.totalorder %s28, 6
      %p347 = por %p345, %p346
      %p348 = scmp.ne.s32.totalorder %s340, %s343
      %p349 = scmp.eq.s32.totalorder %s28, 0
      %p350 = por %p348, %p349
      %p351 = scmp.ne.s32.totalorder %s340, %s343
      %p352 = scmp.eq.s32.totalorder %s33, 6
      %p353 = por %p351, %p352
      %p354 = scmp.ne.s32.totalorder %s343, %s344
      %p355 = scmp.eq.s32.totalorder %s33, 0
      %p356 = por %p354, %p355
      %p357 = scmp.ne.s32.totalorder %s343, %s344
      %p358 = scmp.eq.s32.totalorder %s34, 6
      %p359 = por %p357, %p358
      %p361 = scmp.ne.s32.totalorder %s344, %s360
      %p362 = scmp.eq.s32.totalorder %s34, 0
      %p363 = por %p361, %p362
      %p364 = scmp.le.s32.totalorder 1, %s28
      %p365 = scmp.lt.s32.totalorder %s28, 8
      %p366 = pnand %p364, %p365
      %p367 = pneg %p366
      // Predicated region
      $region9: #{tpu_custom_call.1} parent=5 // pred_check
        _
      $region10: #{tpu_custom_call.1} parent=5 // pred_check_branch
        %369 = sbr.rel (%p366) target = $region12
      $region11: #{tpu_custom_call.1} parent=5 // pred_region
        %s370 = ssub.s32 %s28, 1
        // Predicated region
        $region13: #{tpu_custom_call.1} parent=11 // pred_check
          %p371 = pneg %p94
        $region14: #{tpu_custom_call.1} parent=11 // pred_check_branch
          %373 = sbr.rel (%p371) target = $region16
        $region15: #{tpu_custom_call.1} parent=11 // pred_region
          %p374 = scmp.lt.s32.totalorder %s37, 0
          %s375 = scalar_select %p374, %s37, 0
          %s376 = smul.addr %s375, 4
          %s377 = scalar_lea.vmem %s1, %s376
        $region16: #{tpu_custom_call.1} parent=11 // pred_fallthru
          _
        // Predicated region
        $region17: #{tpu_custom_call.1} parent=11 // pred_check
          %p378 = pneg %p141
        $region18: #{tpu_custom_call.1} parent=11 // pred_check_branch
          %380 = sbr.rel (%p378) target = $region20
        $region19: #{tpu_custom_call.1} parent=11 // pred_region
          %s382 = ssub.s32 112, 112
          %383 = vsyncadd [#allocation6], %s382
          %s385 = sshll.u32 [#allocation7], 4
          %s386 = int_to_ptr.vmem [resolvable:$true] %s385
          %388 = dma.hbm_to_vmem [thread:$0]  %s3, 112, %s386, [#allocation6]
        $region20: #{tpu_custom_call.1} parent=11 // pred_fallthru
          _
        // Predicated region
        $region21: #{tpu_custom_call.1} parent=11 // pred_check
          %p389 = pneg %p162
        $region22: #{tpu_custom_call.1} parent=11 // pred_check_branch
          %391 = sbr.rel (%p389) target = $region24
        $region23: #{tpu_custom_call.1} parent=11 // pred_region
          %s393 = ssub.s32 14336, 14336
          %394 = vsyncadd [#allocation9], %s393
          %s395 = sshll.u32 [#allocation8], 4
          %s396 = int_to_ptr.vmem [resolvable:$true] %s395
          %401 = dma.hbm_to_vmem [thread:$0]  %s4, 14336, %s396, [#allocation9], 128, 128, 8
        $region24: #{tpu_custom_call.1} parent=11 // pred_fallthru
          _
        // Predicated region
        $region25: #{tpu_custom_call.1} parent=11 // pred_check
          %p402 = pneg %p183
        $region26: #{tpu_custom_call.1} parent=11 // pred_check_branch
          %404 = sbr.rel (%p402) target = $region28
        $region27: #{tpu_custom_call.1} parent=11 // pred_region
          %s406 = ssub.s32 32, 32
          %407 = vsyncadd [#allocation9], %s406
          %s409 = sshll.u32 [#allocation10], 4
          %s410 = int_to_ptr.vmem [resolvable:$true] %s409
          %412 = dma.hbm_to_vmem [thread:$0]  %s5, 32, %s410, [#allocation9]
        $region28: #{tpu_custom_call.1} parent=11 // pred_fallthru
          _
        // Predicated region
        $region29: #{tpu_custom_call.1} parent=11 // pred_check
          %p413 = pneg %p204
        $region30: #{tpu_custom_call.1} parent=11 // pred_check_branch
          %415 = sbr.rel (%p413) target = $region32
        $region31: #{tpu_custom_call.1} parent=11 // pred_region
          _
        $region32: #{tpu_custom_call.1} parent=11 // pred_fallthru
          _
        // Predicated region
        $region33: #{tpu_custom_call.1} parent=11 // pred_check
          %p416 = pneg %p225
        $region34: #{tpu_custom_call.1} parent=11 // pred_check_branch
          %418 = sbr.rel (%p416) target = $region36
        $region35: #{tpu_custom_call.1} parent=11 // pred_region
          %s420 = ssub.s32 16, 16
          %421 = vsyncadd [#allocation12], %s420
          %s423 = sshll.u32 [#allocation11], 4
          %s424 = int_to_ptr.vmem [resolvable:$true] %s423
          %426 = dma.hbm_to_vmem [thread:$0]  %s7, 16, %s424, [#allocation12]
        $region36: #{tpu_custom_call.1} parent=11 // pred_fallthru
          _
        // Predicated region
        $region37: #{tpu_custom_call.1} parent=11 // pred_check
          %p427 = pneg %p246
        $region38: #{tpu_custom_call.1} parent=11 // pred_check_branch
          %429 = sbr.rel (%p427) target = $region40
        $region39: #{tpu_custom_call.1} parent=11 // pred_region
          %s431 = ssub.s32 16, 16
          %432 = vsyncadd [#allocation12], %s431
          %s434 = sshll.u32 [#allocation13], 4
          %s435 = int_to_ptr.vmem [resolvable:$true] %s434
          %437 = dma.hbm_to_vmem [thread:$0]  %s8, 16, %s435, [#allocation12]
        $region40: #{tpu_custom_call.1} parent=11 // pred_fallthru
          _
        // Predicated region
        $region41: #{tpu_custom_call.1} parent=11 // pred_check
          %p438 = pneg %p267
        $region42: #{tpu_custom_call.1} parent=11 // pred_check_branch
          %440 = sbr.rel (%p438) target = $region44
        $region43: #{tpu_custom_call.1} parent=11 // pred_region
          %s442 = ssub.s32 16, 16
          %443 = vsyncadd [#allocation15], %s442
          %s445 = sshll.u32 [#allocation14], 4
          %s446 = int_to_ptr.vmem [resolvable:$true] %s445
          %448 = dma.hbm_to_vmem [thread:$0]  %s9, 16, %s446, [#allocation15]
        $region44: #{tpu_custom_call.1} parent=11 // pred_fallthru
          _
        // Predicated region
        $region45: #{tpu_custom_call.1} parent=11 // pred_check
          %p449 = pneg %p288
        $region46: #{tpu_custom_call.1} parent=11 // pred_check_branch
          %451 = sbr.rel (%p449) target = $region48
        $region47: #{tpu_custom_call.1} parent=11 // pred_region
          _
        $region48: #{tpu_custom_call.1} parent=11 // pred_fallthru
          _
        // Predicated region
        $region49: #{tpu_custom_call.1} parent=11 // pred_check
          %p452 = pneg %p309
        $region50: #{tpu_custom_call.1} parent=11 // pred_check_branch
          %454 = sbr.rel (%p452) target = $region52
        $region51: #{tpu_custom_call.1} parent=11 // pred_region
          _
        $region52: #{tpu_custom_call.1} parent=11 // pred_fallthru
          _
        // Predicated region
        $region53: #{tpu_custom_call.1} parent=11 // pred_check
          %p455 = pneg %p330
        $region54: #{tpu_custom_call.1} parent=11 // pred_check_branch
          %457 = sbr.rel (%p455) target = $region56
        $region55: #{tpu_custom_call.1} parent=11 // pred_region
          %s459 = ssub.s32 16, 16
          %460 = vsyncadd [#allocation15], %s459
          %s462 = sshll.u32 [#allocation16], 4
          %s463 = int_to_ptr.vmem [resolvable:$true] %s462
          %465 = dma.hbm_to_vmem [thread:$0]  %s12, 16, %s463, [#allocation15]
        $region56: #{tpu_custom_call.1} parent=11 // pred_fallthru
          _
      $region12: #{tpu_custom_call.1} parent=5 // pred_fallthru
        _
      %p466 = scmp.lt.s32.totalorder %s28, 7
      // Predicated region
      $region57: #{tpu_custom_call.1} parent=5 // pred_check
        %p467 = pneg %p466
      $region58: #{tpu_custom_call.1} parent=5 // pred_check_branch
        %469 = sbr.rel (%p467) target = $region60
      $region59: #{tpu_custom_call.1} parent=5 // pred_region
        // Predicated region
        $region61: #{tpu_custom_call.1} parent=59 // pred_check
          %p470 = pneg %p62
        $region62: #{tpu_custom_call.1} parent=59 // pred_check_branch
          %472 = sbr.rel (%p470) target = $region64
        $region63: #{tpu_custom_call.1} parent=59 // pred_region
          %s473 = sand.u32 %s52, 1
          %s474 = scalar_lea.sflag [#allocation4], %s473
          %s475 = sand.u32 %s52, 1
          %s476 = smul.addr %s475, 8
          %s477 = scalar_lea.vmem [#allocation3], %s476
          %s478 = smul.u32 2, %s36
          %s480 = ssub.s32 128, 128
          %481 = vsyncadd %s474, %s480
          %s482 = smul.addr %s35, 14
          %s483 = sadd.s32 %s478, %s482
          %s484 = smul.addr %s483, 64
          %s485 = scalar_lea.hbm %s0, %s484
          %s487 = sshll.u32 %s477, 4
          %s488 = int_to_ptr.vmem [resolvable:$true] %s487
          %490 = dma.hbm_to_vmem [thread:$0]  %s485, 128, %s488, %s474
        $region64: #{tpu_custom_call.1} parent=59 // pred_fallthru
          _
        // Predicated region
        $region65: #{tpu_custom_call.1} parent=59 // pred_check
          %p491 = pneg %p114
        $region66: #{tpu_custom_call.1} parent=59 // pred_check_branch
          %493 = sbr.rel (%p491) target = $region68
        $region67: #{tpu_custom_call.1} parent=59 // pred_region
          %s494 = sand.u32 %s28, 1
          %s495 = scalar_lea.sflag [#allocation6], %s494
          %s496 = sand.u32 %s104, 1
          %s497 = smul.addr %s496, 896
          %s498 = scalar_lea.vmem [#allocation5], %s497
          %s499 = smul.u32 32, %s36
          %s501 = ssub.s32 14336, 14336
          %502 = vsyncadd %s495, %s501
          %s503 = smul.addr %s499, 7
          %s504 = smul.addr %s503, 64
          %s505 = scalar_lea.hbm %s2, %s504
          %s506 = sshll.u32 %s498, 4
          %s507 = int_to_ptr.vmem [resolvable:$true] %s506
          %512 = dma.hbm_to_vmem [thread:$0]  %s505, 14336, %s507, %s495, 448, 448, 28
        $region68: #{tpu_custom_call.1} parent=59 // pred_fallthru
          _
      $region60: #{tpu_custom_call.1} parent=5 // pred_fallthru
        _
      %p513 = scmp.le.s32.totalorder 1, %s28
      %p514 = scmp.lt.s32.totalorder %s28, 8
      %p515 = pnand %p513, %p514
      %p516 = pneg %p515
      // Predicated region
      $region69: #{tpu_custom_call.1} parent=5 // pred_check
        _
      $region70: #{tpu_custom_call.1} parent=5 // pred_check_branch
        %518 = sbr.rel (%p515) target = $region72
      $region71: #{tpu_custom_call.1} parent=5 // pred_region
        %s519 = ssub.s32 %s28, 1
        %s520 = sand.u32 %s55, 1
        %s521 = scalar_lea.sflag [#allocation4], %s520
        %s522 = sand.u32 %s55, 1
        %s523 = smul.addr %s522, 8
        %s524 = scalar_lea.vmem [#allocation3], %s523
        // Predicated region
        $region73: #{tpu_custom_call.1} parent=71 // pred_check
          %p525 = pneg %p68
        $region74: #{tpu_custom_call.1} parent=71 // pred_check_branch
          %527 = sbr.rel (%p525) target = $region76
        $region75: #{tpu_custom_call.1} parent=71 // pred_region
          %528 = dma.done %s521, 128
        $region76: #{tpu_custom_call.1} parent=71 // pred_fallthru
          _
        %s529 = sand.u32 %s33, 1
        %s530 = scalar_lea.sflag [#allocation6], %s529
        %s531 = sand.u32 %s107, 1
        %s532 = smul.addr %s531, 896
        %s533 = scalar_lea.vmem [#allocation5], %s532
        // Predicated region
        $region77: #{tpu_custom_call.1} parent=71 // pred_check
          %p534 = pneg %p120
        $region78: #{tpu_custom_call.1} parent=71 // pred_check_branch
          %536 = sbr.rel (%p534) target = $region80
        $region79: #{tpu_custom_call.1} parent=71 // pred_region
          %537 = dma.done %s530, 14336
        $region80: #{tpu_custom_call.1} parent=71 // pred_fallthru
          _
        // Predicated region
        $region81: #{tpu_custom_call.1} parent=71 // pred_check
          %p538 = pneg %p141
        $region82: #{tpu_custom_call.1} parent=71 // pred_check_branch
          %540 = sbr.rel (%p538) target = $region84
        $region83: #{tpu_custom_call.1} parent=71 // pred_region
          %541 = dma.done [#allocation6], 112
        $region84: #{tpu_custom_call.1} parent=71 // pred_fallthru
          _
        // Predicated region
        $region85: #{tpu_custom_call.1} parent=71 // pred_check
          %p542 = pneg %p162
        $region86: #{tpu_custom_call.1} parent=71 // pred_check_branch
          %544 = sbr.rel (%p542) target = $region88
        $region87: #{tpu_custom_call.1} parent=71 // pred_region
          %545 = dma.done [#allocation9], 14336
        $region88: #{tpu_custom_call.1} parent=71 // pred_fallthru
          _
        // Predicated region
        $region89: #{tpu_custom_call.1} parent=71 // pred_check
          %p546 = pneg %p183
        $region90: #{tpu_custom_call.1} parent=71 // pred_check_branch
          %548 = sbr.rel (%p546) target = $region92
        $region91: #{tpu_custom_call.1} parent=71 // pred_region
          %549 = dma.done [#allocation9], 32
        $region92: #{tpu_custom_call.1} parent=71 // pred_fallthru
          _
        // Predicated region
        $region93: #{tpu_custom_call.1} parent=71 // pred_check
          %p550 = pneg %p225
        $region94: #{tpu_custom_call.1} parent=71 // pred_check_branch
          %552 = sbr.rel (%p550) target = $region96
        $region95: #{tpu_custom_call.1} parent=71 // pred_region
          %553 = dma.done [#allocation12], 16
        $region96: #{tpu_custom_call.1} parent=71 // pred_fallthru
          _
        // Predicated region
        $region97: #{tpu_custom_call.1} parent=71 // pred_check
          %p554 = pneg %p246
        $region98: #{tpu_custom_call.1} parent=71 // pred_check_branch
          %556 = sbr.rel (%p554) target = $region100
        $region99: #{tpu_custom_call.1} parent=71 // pred_region
          %557 = dma.done [#allocation12], 16
        $region100: #{tpu_custom_call.1} parent=71 // pred_fallthru
          _
        // Predicated region
        $region101: #{tpu_custom_call.1} parent=71 // pred_check
          %p558 = pneg %p267
        $region102: #{tpu_custom_call.1} parent=71 // pred_check_branch
          %560 = sbr.rel (%p558) target = $region104
        $region103: #{tpu_custom_call.1} parent=71 // pred_region
          %561 = dma.done [#allocation15], 16
        $region104: #{tpu_custom_call.1} parent=71 // pred_fallthru
          _
        // Predicated region
        $region105: #{tpu_custom_call.1} parent=71 // pred_check
          %p562 = pneg %p330
        $region106: #{tpu_custom_call.1} parent=71 // pred_check_branch
          %564 = sbr.rel (%p562) target = $region108
        $region107: #{tpu_custom_call.1} parent=71 // pred_region
          %565 = dma.done [#allocation15], 16
        $region108: #{tpu_custom_call.1} parent=71 // pred_fallthru
          _
        %s566 = sand.u32 %s55, 1
        %s567 = scalar_lea.sflag [#allocation4], %s566
        %s568 = sand.u32 %s55, 1
        %s569 = smul.addr %s568, 8
        %s570 = scalar_lea.vmem [#allocation3], %s569
        %p571 = pneg %p68
        %p572 = pneg %p65
        %p573 = scmp.lt.s32.totalorder %s37, 0
        %s574 = scalar_select %p573, %s37, 0
        %s575 = smul.addr %s574, 4
        %s576 = scalar_lea.vmem %s1, %s575
        %p577 = pneg %p94
        %p578 = pneg %p91
        %s579 = sand.u32 %s33, 1
        %s580 = scalar_lea.sflag [#allocation6], %s579
        %s581 = sand.u32 %s107, 1
        %s582 = smul.addr %s581, 896
        %s583 = scalar_lea.vmem [#allocation5], %s582
        %p584 = pneg %p120
        %p585 = pneg %p117
        %p586 = pneg %p141
        %p587 = pneg %p138
        %p588 = pneg %p162
        %p589 = pneg %p159
        %p590 = pneg %p183
        %p591 = pneg %p180
        %p592 = pneg %p204
        %p593 = pneg %p201
        %p594 = pneg %p225
        %p595 = pneg %p222
        %p596 = pneg %p246
        %p597 = pneg %p243
        %p598 = pneg %p267
        %p599 = pneg %p264
        %p600 = pneg %p288
        %p601 = pneg %p285
        %p602 = pneg %p309
        %p603 = pneg %p306
        %p604 = pneg %p330
        %p605 = pneg %p327
        %p606 = pneg %p356
        %p607 = pneg %p353
        %p608 = scmp.lt.s32.totalorder %s37, 0
        %s609 = scalar_select %p608, %s37, 0
        %s610 = smul.addr %s609, 8
        %s611 = scalar_lea.vmem %s13, %s610
        %s612 = smul.u32 2, %s38
        %p613 = scmp.lt.s32.totalorder %s37, 0
        %s614 = scalar_select %p613, %s37, 0
        %s615 = smul.addr %s614, 4
        %s616 = scalar_lea.vmem %s1, %s615
        %s617 = smul.u32 32, %s38
        %p618 = scmp.lt.s32.totalorder %s37, 0
        %s619 = scalar_select %p618, %s37, 0
        %s620 = smul.addr %s619, 8
        %s621 = scalar_lea.vmem %s13, %s620
        %p623 = scmp.eq.s32.totalorder %s38, 0
        // Predicated region
        $region109: #{tpu_custom_call.1} parent=71 // pred_check
          %p624 = pneg %p623
        $region110: #{tpu_custom_call.1} parent=71 // pred_check_branch
          %626 = sbr.rel (%p624) target = $region112
        $region111: #{tpu_custom_call.1} parent=71 // pred_region
          %v627 = vld [vmem:[#allocation7] sm:$0xff]
          %v629 = vlaneseq
          %v630 = vshrl.u32 %v629, 7
          %v631 = vsub.s32 0, %v630
          %v632 = vrot.slane %v627, %v631
          %v633 = vlaneseq
          %v634 = vshrl.u32 %v633, 7
          %v635 = vsub.s32 1, %v634
          %v636 = vrot.slane %v627, %v635
          %v637 = vlaneseq
          %v638 = vshrl.u32 %v637, 7
          %v639 = vsub.s32 2, %v638
          %v640 = vrot.slane %v627, %v639
          %v641 = vlaneseq
          %v642 = vshrl.u32 %v641, 7
          %v643 = vsub.s32 3, %v642
          %v644 = vrot.slane %v627, %v643
          %v645 = vlaneseq
          %v646 = vshrl.u32 %v645, 7
          %v647 = vsub.s32 4, %v646
          %v648 = vrot.slane %v627, %v647
          %v649 = vlaneseq
          %v650 = vshrl.u32 %v649, 7
          %v651 = vsub.s32 5, %v650
          %v652 = vrot.slane %v627, %v651
          %v653 = vlaneseq
          %v654 = vshrl.u32 %v653, 7
          %v655 = vsub.s32 6, %v654
          %v656 = vrot.slane %v627, %v655
          %664 = vst [vmem:[#allocation2] sm:$0xff] %v632
          %665 = vst [vmem:[#allocation2 + $0x8] sm:$0xff] %v636
          %666 = vst [vmem:[#allocation2 + $0x10] sm:$0xff] %v640
          %667 = vst [vmem:[#allocation2 + $0x18] sm:$0xff] %v644
          %668 = vst [vmem:[#allocation2 + $0x20] sm:$0xff] %v648
          %669 = vst [vmem:[#allocation2 + $0x28] sm:$0xff] %v652
          %670 = vst [vmem:[#allocation2 + $0x30] sm:$0xff] %v656
        $region112: #{tpu_custom_call.1} parent=71 // pred_fallthru
          _
        %v671 = vld [vmem:[#allocation2] sm:$0xff]
        %v672 = vld [vmem:[#allocation2 + $0x8] sm:$0xff]
        %v673 = vld [vmem:[#allocation2 + $0x10] sm:$0xff]
        %v674 = vld [vmem:[#allocation2 + $0x18] sm:$0xff]
        %v675 = vld [vmem:[#allocation2 + $0x20] sm:$0xff]
        %v676 = vld [vmem:[#allocation2 + $0x28] sm:$0xff]
        %v677 = vld [vmem:[#allocation2 + $0x30] sm:$0xff]
        %v678 = vld [vmem:[%s524] sm:$0xff]
        %v679 = vld [vmem:[%s533] sm:$0xff]
        %v680 = vld [vmem:[%s533 + $0x8] sm:$0xff]
        %v681 = vld [vmem:[%s533 + $0x10] sm:$0xff]
        %v682 = vld [vmem:[%s533 + $0x18] sm:$0xf]
        %v683 = vld [vmem:[%s533 + $0x1c] sm:$0xff]
        %v684 = vld [vmem:[%s533 + $0x24] sm:$0xff]
        %v685 = vld [vmem:[%s533 + $0x2c] sm:$0xff]
        %v686 = vld [vmem:[%s533 + $0x34] sm:$0xf]
        %v687 = vld [vmem:[%s533 + $0x38] sm:$0xff]
        %v688 = vld [vmem:[%s533 + $0x40] sm:$0xff]
        %v689 = vld [vmem:[%s533 + $0x48] sm:$0xff]
        %v690 = vld [vmem:[%s533 + $0x50] sm:$0xf]
        %v691 = vld [vmem:[%s533 + $0x54] sm:$0xff]
        %v692 = vld [vmem:[%s533 + $0x5c] sm:$0xff]
        %v693 = vld [vmem:[%s533 + $0x64] sm:$0xff]
        %v694 = vld [vmem:[%s533 + $0x6c] sm:$0xf]
        %v695 = vld [vmem:[%s533 + $0x70] sm:$0xff]
        %v696 = vld [vmem:[%s533 + $0x78] sm:$0xff]
        %v697 = vld [vmem:[%s533 + $0x80] sm:$0xff]
        %v698 = vld [vmem:[%s533 + $0x88] sm:$0xf]
        %v699 = vld [vmem:[%s533 + $0x8c] sm:$0xff]
        %v700 = vld [vmem:[%s533 + $0x94] sm:$0xff]
        %v701 = vld [vmem:[%s533 + $0x9c] sm:$0xff]
        %v702 = vld [vmem:[%s533 + $0xa4] sm:$0xf]
        %v703 = vld [vmem:[%s533 + $0xa8] sm:$0xff]
        %v704 = vld [vmem:[%s533 + $0xb0] sm:$0xff]
        %v705 = vld [vmem:[%s533 + $0xb8] sm:$0xff]
        %v706 = vld [vmem:[%s533 + $0xc0] sm:$0xf]
        %v707 = vld [vmem:[%s533 + $0xc4] sm:$0xff]
        %v708 = vld [vmem:[%s533 + $0xcc] sm:$0xff]
        %v709 = vld [vmem:[%s533 + $0xd4] sm:$0xff]
        %v710 = vld [vmem:[%s533 + $0xdc] sm:$0xf]
        %v711 = vld [vmem:[%s533 + $0xe0] sm:$0xff]
        %v712 = vld [vmem:[%s533 + $0xe8] sm:$0xff]
        %v713 = vld [vmem:[%s533 + $0xf0] sm:$0xff]
        %v714 = vld [vmem:[%s533 + $0xf8] sm:$0xf]
        %v715 = vld [vmem:[%s533 + $0xfc] sm:$0xff]
        %v716 = vld [vmem:[%s533 + $0x104] sm:$0xff]
        %v717 = vld [vmem:[%s533 + $0x10c] sm:$0xff]
        %v718 = vld [vmem:[%s533 + $0x114] sm:$0xf]
        %v719 = vld [vmem:[%s533 + $0x118] sm:$0xff]
        %v720 = vld [vmem:[%s533 + $0x120] sm:$0xff]
        %v721 = vld [vmem:[%s533 + $0x128] sm:$0xff]
        %v722 = vld [vmem:[%s533 + $0x130] sm:$0xf]
        %v723 = vld [vmem:[%s533 + $0x134] sm:$0xff]
        %v724 = vld [vmem:[%s533 + $0x13c] sm:$0xff]
        %v725 = vld [vmem:[%s533 + $0x144] sm:$0xff]
        %v726 = vld [vmem:[%s533 + $0x14c] sm:$0xf]
        %v727 = vld [vmem:[%s533 + $0x150] sm:$0xff]
        %v728 = vld [vmem:[%s533 + $0x158] sm:$0xff]
        %v729 = vld [vmem:[%s533 + $0x160] sm:$0xff]
        %v730 = vld [vmem:[%s533 + $0x168] sm:$0xf]
        %v731 = vld [vmem:[%s533 + $0x16c] sm:$0xff]
        %v732 = vld [vmem:[%s533 + $0x174] sm:$0xff]
        %v733 = vld [vmem:[%s533 + $0x17c] sm:$0xff]
        %v734 = vld [vmem:[%s533 + $0x184] sm:$0xf]
        %v735 = vld [vmem:[%s533 + $0x188] sm:$0xff]
        %v736 = vld [vmem:[%s533 + $0x190] sm:$0xff]
        %v737 = vld [vmem:[%s533 + $0x198] sm:$0xff]
        %v738 = vld [vmem:[%s533 + $0x1a0] sm:$0xf]
        %v739 = vld [vmem:[%s533 + $0x1a4] sm:$0xff]
        %v740 = vld [vmem:[%s533 + $0x1ac] sm:$0xff]
        %v741 = vld [vmem:[%s533 + $0x1b4] sm:$0xff]
        %v742 = vld [vmem:[%s533 + $0x1bc] sm:$0xf]
        %v743 = vld [vmem:[%s533 + $0x1c0] sm:$0xff]
        %v744 = vld [vmem:[%s533 + $0x1c8] sm:$0xff]
        %v745 = vld [vmem:[%s533 + $0x1d0] sm:$0xff]
        %v746 = vld [vmem:[%s533 + $0x1d8] sm:$0xf]
        %v747 = vld [vmem:[%s533 + $0x1dc] sm:$0xff]
        %v748 = vld [vmem:[%s533 + $0x1e4] sm:$0xff]
        %v749 = vld [vmem:[%s533 + $0x1ec] sm:$0xff]
        %v750 = vld [vmem:[%s533 + $0x1f4] sm:$0xf]
        %v751 = vld [vmem:[%s533 + $0x1f8] sm:$0xff]
        %v752 = vld [vmem:[%s533 + $0x200] sm:$0xff]
        %v753 = vld [vmem:[%s533 + $0x208] sm:$0xff]
        %v754 = vld [vmem:[%s533 + $0x210] sm:$0xf]
        %v755 = vld [vmem:[%s533 + $0x214] sm:$0xff]
        %v756 = vld [vmem:[%s533 + $0x21c] sm:$0xff]
        %v757 = vld [vmem:[%s533 + $0x224] sm:$0xff]
        %v758 = vld [vmem:[%s533 + $0x22c] sm:$0xf]
        %v759 = vld [vmem:[%s533 + $0x230] sm:$0xff]
        %v760 = vld [vmem:[%s533 + $0x238] sm:$0xff]
        %v761 = vld [vmem:[%s533 + $0x240] sm:$0xff]
        %v762 = vld [vmem:[%s533 + $0x248] sm:$0xf]
        %v763 = vld [vmem:[%s533 + $0x24c] sm:$0xff]
        %v764 = vld [vmem:[%s533 + $0x254] sm:$0xff]
        %v765 = vld [vmem:[%s533 + $0x25c] sm:$0xff]
        %v766 = vld [vmem:[%s533 + $0x264] sm:$0xf]
        %v767 = vld [vmem:[%s533 + $0x268] sm:$0xff]
        %v768 = vld [vmem:[%s533 + $0x270] sm:$0xff]
        %v769 = vld [vmem:[%s533 + $0x278] sm:$0xff]
        %v770 = vld [vmem:[%s533 + $0x280] sm:$0xf]
        %v771 = vld [vmem:[%s533 + $0x284] sm:$0xff]
        %v772 = vld [vmem:[%s533 + $0x28c] sm:$0xff]
        %v773 = vld [vmem:[%s533 + $0x294] sm:$0xff]
        %v774 = vld [vmem:[%s533 + $0x29c] sm:$0xf]
        %v775 = vld [vmem:[%s533 + $0x2a0] sm:$0xff]
        %v776 = vld [vmem:[%s533 + $0x2a8] sm:$0xff]
        %v777 = vld [vmem:[%s533 + $0x2b0] sm:$0xff]
        %v778 = vld [vmem:[%s533 + $0x2b8] sm:$0xf]
        %v779 = vld [vmem:[%s533 + $0x2bc] sm:$0xff]
        %v780 = vld [vmem:[%s533 + $0x2c4] sm:$0xff]
        %v781 = vld [vmem:[%s533 + $0x2cc] sm:$0xff]
        %v782 = vld [vmem:[%s533 + $0x2d4] sm:$0xf]
        %v783 = vld [vmem:[%s533 + $0x2d8] sm:$0xff]
        %v784 = vld [vmem:[%s533 + $0x2e0] sm:$0xff]
        %v785 = vld [vmem:[%s533 + $0x2e8] sm:$0xff]
        %v786 = vld [vmem:[%s533 + $0x2f0] sm:$0xf]
        %v787 = vld [vmem:[%s533 + $0x2f4] sm:$0xff]
        %v788 = vld [vmem:[%s533 + $0x2fc] sm:$0xff]
        %v789 = vld [vmem:[%s533 + $0x304] sm:$0xff]
        %v790 = vld [vmem:[%s533 + $0x30c] sm:$0xf]
        %v791 = vld [vmem:[%s533 + $0x310] sm:$0xff]
        %v792 = vld [vmem:[%s533 + $0x318] sm:$0xff]
        %v793 = vld [vmem:[%s533 + $0x320] sm:$0xff]
        %v794 = vld [vmem:[%s533 + $0x328] sm:$0xf]
        %v795 = vld [vmem:[%s533 + $0x32c] sm:$0xff]
        %v796 = vld [vmem:[%s533 + $0x334] sm:$0xff]
        %v797 = vld [vmem:[%s533 + $0x33c] sm:$0xff]
        %v798 = vld [vmem:[%s533 + $0x344] sm:$0xf]
        %v799 = vld [vmem:[%s533 + $0x348] sm:$0xff]
        %v800 = vld [vmem:[%s533 + $0x350] sm:$0xff]
        %v801 = vld [vmem:[%s533 + $0x358] sm:$0xff]
        %v802 = vld [vmem:[%s533 + $0x360] sm:$0xf]
        %v803 = vld [vmem:[%s533 + $0x364] sm:$0xff]
        %v804 = vld [vmem:[%s533 + $0x36c] sm:$0xff]
        %v805 = vld [vmem:[%s533 + $0x374] sm:$0xff]
        %v806 = vld [vmem:[%s533 + $0x37c] sm:$0xf]
        %v808 = vunpack.c.l.b16 %v678
        %v809 = vunpack.c.h.b16 %v678
        %v810 = vpack.c.b16 %v808, %v808
        %v811 = vpack.c.b16 %v809, %v809
        %v942 = vunpack.c.l.b16 %v679
        %v943 = vunpack.c.h.b16 %v679
        %v944 = vunpack.c.l.b16 %v680
        %v945 = vunpack.c.h.b16 %v680
        %v946 = vunpack.c.l.b16 %v681
        %v947 = vunpack.c.h.b16 %v681
        %v948 = vunpack.c.l.b16 %v682
        %v949 = vunpack.c.l.b16 %v683
        %v950 = vunpack.c.h.b16 %v683
        %v951 = vunpack.c.l.b16 %v684
        %v952 = vunpack.c.h.b16 %v684
        %v953 = vunpack.c.l.b16 %v685
        %v954 = vunpack.c.h.b16 %v685
        %v955 = vunpack.c.l.b16 %v686
        %v956 = vunpack.c.l.b16 %v687
        %v957 = vunpack.c.h.b16 %v687
        %v958 = vunpack.c.l.b16 %v688
        %v959 = vunpack.c.h.b16 %v688
        %v960 = vunpack.c.l.b16 %v689
        %v961 = vunpack.c.h.b16 %v689
        %v962 = vunpack.c.l.b16 %v690
        %v963 = vunpack.c.l.b16 %v691
        %v964 = vunpack.c.h.b16 %v691
        %v965 = vunpack.c.l.b16 %v692
        %v966 = vunpack.c.h.b16 %v692
        %v967 = vunpack.c.l.b16 %v693
        %v968 = vunpack.c.h.b16 %v693
        %v969 = vunpack.c.l.b16 %v694
        %v970 = vunpack.c.l.b16 %v695
        %v971 = vunpack.c.h.b16 %v695
        %v972 = vunpack.c.l.b16 %v696
        %v973 = vunpack.c.h.b16 %v696
        %v974 = vunpack.c.l.b16 %v697
        %v975 = vunpack.c.h.b16 %v697
        %v976 = vunpack.c.l.b16 %v698
        %v977 = vunpack.c.l.b16 %v699
        %v978 = vunpack.c.h.b16 %v699
        %v979 = vunpack.c.l.b16 %v700
        %v980 = vunpack.c.h.b16 %v700
        %v981 = vunpack.c.l.b16 %v701
        %v982 = vunpack.c.h.b16 %v701
        %v983 = vunpack.c.l.b16 %v702
        %v984 = vunpack.c.l.b16 %v703
        %v985 = vunpack.c.h.b16 %v703
        %v986 = vunpack.c.l.b16 %v704
        %v987 = vunpack.c.h.b16 %v704
        %v988 = vunpack.c.l.b16 %v705
        %v989 = vunpack.c.h.b16 %v705
        %v990 = vunpack.c.l.b16 %v706
        %v991 = vunpack.c.l.b16 %v707
        %v992 = vunpack.c.h.b16 %v707
        %v993 = vunpack.c.l.b16 %v708
        %v994 = vunpack.c.h.b16 %v708
        %v995 = vunpack.c.l.b16 %v709
        %v996 = vunpack.c.h.b16 %v709
        %v997 = vunpack.c.l.b16 %v710
        %v998 = vunpack.c.l.b16 %v711
        %v999 = vunpack.c.h.b16 %v711
        %v1000 = vunpack.c.l.b16 %v712
        %v1001 = vunpack.c.h.b16 %v712
        %v1002 = vunpack.c.l.b16 %v713
        %v1003 = vunpack.c.h.b16 %v713
        %v1004 = vunpack.c.l.b16 %v714
        %v1005 = vunpack.c.l.b16 %v715
        %v1006 = vunpack.c.h.b16 %v715
        %v1007 = vunpack.c.l.b16 %v716
        %v1008 = vunpack.c.h.b16 %v716
        %v1009 = vunpack.c.l.b16 %v717
        %v1010 = vunpack.c.h.b16 %v717
        %v1011 = vunpack.c.l.b16 %v718
        %v1012 = vunpack.c.l.b16 %v719
        %v1013 = vunpack.c.h.b16 %v719
        %v1014 = vunpack.c.l.b16 %v720
        %v1015 = vunpack.c.h.b16 %v720
        %v1016 = vunpack.c.l.b16 %v721
        %v1017 = vunpack.c.h.b16 %v721
        %v1018 = vunpack.c.l.b16 %v722
        %v1019 = vunpack.c.l.b16 %v723
        %v1020 = vunpack.c.h.b16 %v723
        %v1021 = vunpack.c.l.b16 %v724
        %v1022 = vunpack.c.h.b16 %v724
        %v1023 = vunpack.c.l.b16 %v725
        %v1024 = vunpack.c.h.b16 %v725
        %v1025 = vunpack.c.l.b16 %v726
        %v1026 = vunpack.c.l.b16 %v727
        %v1027 = vunpack.c.h.b16 %v727
        %v1028 = vunpack.c.l.b16 %v728
        %v1029 = vunpack.c.h.b16 %v728
        %v1030 = vunpack.c.l.b16 %v729
        %v1031 = vunpack.c.h.b16 %v729
        %v1032 = vunpack.c.l.b16 %v730
        %v1033 = vunpack.c.l.b16 %v731
        %v1034 = vunpack.c.h.b16 %v731
        %v1035 = vunpack.c.l.b16 %v732
        %v1036 = vunpack.c.h.b16 %v732
        %v1037 = vunpack.c.l.b16 %v733
        %v1038 = vunpack.c.h.b16 %v733
        %v1039 = vunpack.c.l.b16 %v734
        %v1040 = vunpack.c.l.b16 %v735
        %v1041 = vunpack.c.h.b16 %v735
        %v1042 = vunpack.c.l.b16 %v736
        %v1043 = vunpack.c.h.b16 %v736
        %v1044 = vunpack.c.l.b16 %v737
        %v1045 = vunpack.c.h.b16 %v737
        %v1046 = vunpack.c.l.b16 %v738
        %v1047 = vunpack.c.l.b16 %v739
        %v1048 = vunpack.c.h.b16 %v739
        %v1049 = vunpack.c.l.b16 %v740
        %v1050 = vunpack.c.h.b16 %v740
        %v1051 = vunpack.c.l.b16 %v741
        %v1052 = vunpack.c.h.b16 %v741
        %v1053 = vunpack.c.l.b16 %v742
        %v1054 = vunpack.c.l.b16 %v743
        %v1055 = vunpack.c.h.b16 %v743
        %v1056 = vunpack.c.l.b16 %v744
        %v1057 = vunpack.c.h.b16 %v744
        %v1058 = vunpack.c.l.b16 %v745
        %v1059 = vunpack.c.h.b16 %v745
        %v1060 = vunpack.c.l.b16 %v746
        %v1061 = vunpack.c.l.b16 %v747
        %v1062 = vunpack.c.h.b16 %v747
        %v1063 = vunpack.c.l.b16 %v748
        %v1064 = vunpack.c.h.b16 %v748
        %v1065 = vunpack.c.l.b16 %v749
        %v1066 = vunpack.c.h.b16 %v749
        %v1067 = vunpack.c.l.b16 %v750
        %v1068 = vunpack.c.l.b16 %v751
        %v1069 = vunpack.c.h.b16 %v751
        %v1070 = vunpack.c.l.b16 %v752
        %v1071 = vunpack.c.h.b16 %v752
        %v1072 = vunpack.c.l.b16 %v753
        %v1073 = vunpack.c.h.b16 %v753
        %v1074 = vunpack.c.l.b16 %v754
        %v1075 = vunpack.c.l.b16 %v755
        %v1076 = vunpack.c.h.b16 %v755
        %v1077 = vunpack.c.l.b16 %v756
        %v1078 = vunpack.c.h.b16 %v756
        %v1079 = vunpack.c.l.b16 %v757
        %v1080 = vunpack.c.h.b16 %v757
        %v1081 = vunpack.c.l.b16 %v758
        %v1082 = vunpack.c.l.b16 %v759
        %v1083 = vunpack.c.h.b16 %v759
        %v1084 = vunpack.c.l.b16 %v760
        %v1085 = vunpack.c.h.b16 %v760
        %v1086 = vunpack.c.l.b16 %v761
        %v1087 = vunpack.c.h.b16 %v761
        %v1088 = vunpack.c.l.b16 %v762
        %v1089 = vunpack.c.l.b16 %v763
        %v1090 = vunpack.c.h.b16 %v763
        %v1091 = vunpack.c.l.b16 %v764
        %v1092 = vunpack.c.h.b16 %v764
        %v1093 = vunpack.c.l.b16 %v765
        %v1094 = vunpack.c.h.b16 %v765
        %v1095 = vunpack.c.l.b16 %v766
        %v1096 = vunpack.c.l.b16 %v767
        %v1097 = vunpack.c.h.b16 %v767
        %v1098 = vunpack.c.l.b16 %v768
        %v1099 = vunpack.c.h.b16 %v768
        %v1100 = vunpack.c.l.b16 %v769
        %v1101 = vunpack.c.h.b16 %v769
        %v1102 = vunpack.c.l.b16 %v770
        %v1103 = vunpack.c.l.b16 %v771
        %v1104 = vunpack.c.h.b16 %v771
        %v1105 = vunpack.c.l.b16 %v772
        %v1106 = vunpack.c.h.b16 %v772
        %v1107 = vunpack.c.l.b16 %v773
        %v1108 = vunpack.c.h.b16 %v773
        %v1109 = vunpack.c.l.b16 %v774
        %v1110 = vunpack.c.l.b16 %v775
        %v1111 = vunpack.c.h.b16 %v775
        %v1112 = vunpack.c.l.b16 %v776
        %v1113 = vunpack.c.h.b16 %v776
        %v1114 = vunpack.c.l.b16 %v777
        %v1115 = vunpack.c.h.b16 %v777
        %v1116 = vunpack.c.l.b16 %v778
        %v1117 = vunpack.c.l.b16 %v779
        %v1118 = vunpack.c.h.b16 %v779
        %v1119 = vunpack.c.l.b16 %v780
        %v1120 = vunpack.c.h.b16 %v780
        %v1121 = vunpack.c.l.b16 %v781
        %v1122 = vunpack.c.h.b16 %v781
        %v1123 = vunpack.c.l.b16 %v782
        %v1124 = vunpack.c.l.b16 %v783
        %v1125 = vunpack.c.h.b16 %v783
        %v1126 = vunpack.c.l.b16 %v784
        %v1127 = vunpack.c.h.b16 %v784
        %v1128 = vunpack.c.l.b16 %v785
        %v1129 = vunpack.c.h.b16 %v785
        %v1130 = vunpack.c.l.b16 %v786
        %v1131 = vunpack.c.l.b16 %v787
        %v1132 = vunpack.c.h.b16 %v787
        %v1133 = vunpack.c.l.b16 %v788
        %v1134 = vunpack.c.h.b16 %v788
        %v1135 = vunpack.c.l.b16 %v789
        %v1136 = vunpack.c.h.b16 %v789
        %v1137 = vunpack.c.l.b16 %v790
        %v1138 = vunpack.c.l.b16 %v791
        %v1139 = vunpack.c.h.b16 %v791
        %v1140 = vunpack.c.l.b16 %v792
        %v1141 = vunpack.c.h.b16 %v792
        %v1142 = vunpack.c.l.b16 %v793
        %v1143 = vunpack.c.h.b16 %v793
        %v1144 = vunpack.c.l.b16 %v794
        %v1145 = vunpack.c.l.b16 %v795
        %v1146 = vunpack.c.h.b16 %v795
        %v1147 = vunpack.c.l.b16 %v796
        %v1148 = vunpack.c.h.b16 %v796
        %v1149 = vunpack.c.l.b16 %v797
        %v1150 = vunpack.c.h.b16 %v797
        %v1151 = vunpack.c.l.b16 %v798
        %v1152 = vunpack.c.l.b16 %v799
        %v1153 = vunpack.c.h.b16 %v799
        %v1154 = vunpack.c.l.b16 %v800
        %v1155 = vunpack.c.h.b16 %v800
        %v1156 = vunpack.c.l.b16 %v801
        %v1157 = vunpack.c.h.b16 %v801
        %v1158 = vunpack.c.l.b16 %v802
        %v1159 = vunpack.c.l.b16 %v803
        %v1160 = vunpack.c.h.b16 %v803
        %v1161 = vunpack.c.l.b16 %v804
        %v1162 = vunpack.c.h.b16 %v804
        %v1163 = vunpack.c.l.b16 %v805
        %v1164 = vunpack.c.h.b16 %v805
        %v1165 = vunpack.c.l.b16 %v806
        %v1166 = vpack.c.b16 %v949, %v942
        %v1167 = vpack.c.b16 %v950, %v943
        %v1168 = vpack.c.b16 %v951, %v944
        %v1169 = vpack.c.b16 %v952, %v945
        %v1170 = vpack.c.b16 %v953, %v946
        %v1171 = vpack.c.b16 %v954, %v947
        %v1172 = vpack.c.b16 %v955, %v948
        %v1173 = vpack.c.b16 %v963, %v956
        %v1174 = vpack.c.b16 %v964, %v957
        %v1175 = vpack.c.b16 %v965, %v958
        %v1176 = vpack.c.b16 %v966, %v959
        %v1177 = vpack.c.b16 %v967, %v960
        %v1178 = vpack.c.b16 %v968, %v961
        %v1179 = vpack.c.b16 %v969, %v962
        %v1180 = vpack.c.b16 %v977, %v970
        %v1181 = vpack.c.b16 %v978, %v971
        %v1182 = vpack.c.b16 %v979, %v972
        %v1183 = vpack.c.b16 %v980, %v973
        %v1184 = vpack.c.b16 %v981, %v974
        %v1185 = vpack.c.b16 %v982, %v975
        %v1186 = vpack.c.b16 %v983, %v976
        %v1187 = vpack.c.b16 %v991, %v984
        %v1188 = vpack.c.b16 %v992, %v985
        %v1189 = vpack.c.b16 %v993, %v986
        %v1190 = vpack.c.b16 %v994, %v987
        %v1191 = vpack.c.b16 %v995, %v988
        %v1192 = vpack.c.b16 %v996, %v989
        %v1193 = vpack.c.b16 %v997, %v990
        %v1194 = vpack.c.b16 %v1005, %v998
        %v1195 = vpack.c.b16 %v1006, %v999
        %v1196 = vpack.c.b16 %v1007, %v1000
        %v1197 = vpack.c.b16 %v1008, %v1001
        %v1198 = vpack.c.b16 %v1009, %v1002
        %v1199 = vpack.c.b16 %v1010, %v1003
        %v1200 = vpack.c.b16 %v1011, %v1004
        %v1201 = vpack.c.b16 %v1019, %v1012
        %v1202 = vpack.c.b16 %v1020, %v1013
        %v1203 = vpack.c.b16 %v1021, %v1014
        %v1204 = vpack.c.b16 %v1022, %v1015
        %v1205 = vpack.c.b16 %v1023, %v1016
        %v1206 = vpack.c.b16 %v1024, %v1017
        %v1207 = vpack.c.b16 %v1025, %v1018
        %v1208 = vpack.c.b16 %v1033, %v1026
        %v1209 = vpack.c.b16 %v1034, %v1027
        %v1210 = vpack.c.b16 %v1035, %v1028
        %v1211 = vpack.c.b16 %v1036, %v1029
        %v1212 = vpack.c.b16 %v1037, %v1030
        %v1213 = vpack.c.b16 %v1038, %v1031
        %v1214 = vpack.c.b16 %v1039, %v1032
        %v1215 = vpack.c.b16 %v1047, %v1040
        %v1216 = vpack.c.b16 %v1048, %v1041
        %v1217 = vpack.c.b16 %v1049, %v1042
        %v1218 = vpack.c.b16 %v1050, %v1043
        %v1219 = vpack.c.b16 %v1051, %v1044
        %v1220 = vpack.c.b16 %v1052, %v1045
        %v1221 = vpack.c.b16 %v1053, %v1046
        %v1222 = vpack.c.b16 %v1061, %v1054
        %v1223 = vpack.c.b16 %v1062, %v1055
        %v1224 = vpack.c.b16 %v1063, %v1056
        %v1225 = vpack.c.b16 %v1064, %v1057
        %v1226 = vpack.c.b16 %v1065, %v1058
        %v1227 = vpack.c.b16 %v1066, %v1059
        %v1228 = vpack.c.b16 %v1067, %v1060
        %v1229 = vpack.c.b16 %v1075, %v1068
        %v1230 = vpack.c.b16 %v1076, %v1069
        %v1231 = vpack.c.b16 %v1077, %v1070
        %v1232 = vpack.c.b16 %v1078, %v1071
        %v1233 = vpack.c.b16 %v1079, %v1072
        %v1234 = vpack.c.b16 %v1080, %v1073
        %v1235 = vpack.c.b16 %v1081, %v1074
        %v1236 = vpack.c.b16 %v1089, %v1082
        %v1237 = vpack.c.b16 %v1090, %v1083
        %v1238 = vpack.c.b16 %v1091, %v1084
        %v1239 = vpack.c.b16 %v1092, %v1085
        %v1240 = vpack.c.b16 %v1093, %v1086
        %v1241 = vpack.c.b16 %v1094, %v1087
        %v1242 = vpack.c.b16 %v1095, %v1088
        %v1243 = vpack.c.b16 %v1103, %v1096
        %v1244 = vpack.c.b16 %v1104, %v1097
        %v1245 = vpack.c.b16 %v1105, %v1098
        %v1246 = vpack.c.b16 %v1106, %v1099
        %v1247 = vpack.c.b16 %v1107, %v1100
        %v1248 = vpack.c.b16 %v1108, %v1101
        %v1249 = vpack.c.b16 %v1109, %v1102
        %v1250 = vpack.c.b16 %v1117, %v1110
        %v1251 = vpack.c.b16 %v1118, %v1111
        %v1252 = vpack.c.b16 %v1119, %v1112
        %v1253 = vpack.c.b16 %v1120, %v1113
        %v1254 = vpack.c.b16 %v1121, %v1114
        %v1255 = vpack.c.b16 %v1122, %v1115
        %v1256 = vpack.c.b16 %v1123, %v1116
        %v1257 = vpack.c.b16 %v1131, %v1124
        %v1258 = vpack.c.b16 %v1132, %v1125
        %v1259 = vpack.c.b16 %v1133, %v1126
        %v1260 = vpack.c.b16 %v1134, %v1127
        %v1261 = vpack.c.b16 %v1135, %v1128
        %v1262 = vpack.c.b16 %v1136, %v1129
        %v1263 = vpack.c.b16 %v1137, %v1130
        %v1264 = vpack.c.b16 %v1145, %v1138
        %v1265 = vpack.c.b16 %v1146, %v1139
        %v1266 = vpack.c.b16 %v1147, %v1140
        %v1267 = vpack.c.b16 %v1148, %v1141
        %v1268 = vpack.c.b16 %v1149, %v1142
        %v1269 = vpack.c.b16 %v1150, %v1143
        %v1270 = vpack.c.b16 %v1151, %v1144
        %v1271 = vpack.c.b16 %v1159, %v1152
        %v1272 = vpack.c.b16 %v1160, %v1153
        %v1273 = vpack.c.b16 %v1161, %v1154
        %v1274 = vpack.c.b16 %v1162, %v1155
        %v1275 = vpack.c.b16 %v1163, %v1156
        %v1276 = vpack.c.b16 %v1164, %v1157
        %v1277 = vpack.c.b16 %v1165, %v1158
        %1390 = vmatprep.subr.bf16.mxu0 %v1167
        %1391 = vmatpush1.bf16.msra.mxu0 %v1166
        %1392 = vmatprep.subr.bf16.mxu0 %v1174
        %1393 = vmatpush1.bf16.msra.mxu0 %v1173
        %1394 = vmatprep.subr.bf16.mxu0 %v1181
        %1395 = vmatpush1.bf16.msra.mxu0 %v1180
        %1396 = vmatprep.subr.bf16.mxu0 %v1188
        %1397 = vmatpush1.bf16.msra.mxu0 %v1187
        %1398 = vmatprep.subr.bf16.mxu0 %v1195
        %1399 = vmatpush1.bf16.msra.mxu0 %v1194
        %1400 = vmatprep.subr.bf16.mxu0 %v1202
        %1401 = vmatpush1.bf16.msra.mxu0 %v1201
        %1402 = vmatprep.subr.bf16.mxu0 %v1209
        %1403 = vmatpush1.bf16.msra.mxu0 %v1208
        %1404 = vmatprep.subr.bf16.mxu0 %v1216
        %1405 = vmatpush1.bf16.msra.mxu0 %v1215
        %1406 = vmatprep.subr.bf16.mxu0 %v1223
        %1407 = vmatpush1.bf16.msra.mxu0 %v1222
        %1408 = vmatprep.subr.bf16.mxu0 %v1230
        %1409 = vmatpush1.bf16.msra.mxu0 %v1229
        %1410 = vmatprep.subr.bf16.mxu0 %v1237
        %1411 = vmatpush1.bf16.msra.mxu0 %v1236
        %1412 = vmatprep.subr.bf16.mxu0 %v1244
        %1413 = vmatpush1.bf16.msra.mxu0 %v1243
        %1414 = vmatprep.subr.bf16.mxu0 %v1251
        %1415 = vmatpush1.bf16.msra.mxu0 %v1250
        %1416 = vmatprep.subr.bf16.mxu0 %v1258
        %1417 = vmatpush1.bf16.msra.mxu0 %v1257
        %1418 = vmatprep.subr.bf16.mxu0 %v1265
        %1419 = vmatpush1.bf16.msra.mxu0 %v1264
        %1420 = vmatprep.subr.bf16.mxu0 %v1272
        %1421 = vmatpush1.bf16.msra.mxu0 %v1271
        %1422 = vmatprep.mubr.bf16.mxu0 %v811
        %1423 = vmatmul.mubr.bf16.gmra.mrb[0].mxu0 %v810
        %v1424 = vpop.f32.mrb[0].mxu0
        %v1425 = vadd.f32 0.0, %v1424
        %v1426 = vpop.f32.mrb[0].mxu0
        %v1427 = vadd.f32 0.0, %v1426
        %v1428 = vpop.f32.mrb[0].mxu0
        %v1429 = vpop.f32.mrb[0].mxu0
        %1430 = vdwg.mxu0
        %1431 = vmatprep.subr.bf16.mxu0 %v1169
        %1432 = vmatpush1.bf16.msra.mxu0 %v1168
        %1433 = vmatprep.subr.bf16.mxu0 %v1176
        %1434 = vmatpush1.bf16.msra.mxu0 %v1175
        %1435 = vmatprep.subr.bf16.mxu0 %v1183
        %1436 = vmatpush1.bf16.msra.mxu0 %v1182
        %1437 = vmatprep.subr.bf16.mxu0 %v1190
        %1438 = vmatpush1.bf16.msra.mxu0 %v1189
        %1439 = vmatprep.subr.bf16.mxu0 %v1197
        %1440 = vmatpush1.bf16.msra.mxu0 %v1196
        %1441 = vmatprep.subr.bf16.mxu0 %v1204
        %1442 = vmatpush1.bf16.msra.mxu0 %v1203
        %1443 = vmatprep.subr.bf16.mxu0 %v1211
        %1444 = vmatpush1.bf16.msra.mxu0 %v1210
        %1445 = vmatprep.subr.bf16.mxu0 %v1218
        %1446 = vmatpush1.bf16.msra.mxu0 %v1217
        %1447 = vmatprep.subr.bf16.mxu0 %v1225
        %1448 = vmatpush1.bf16.msra.mxu0 %v1224
        %1449 = vmatprep.subr.bf16.mxu0 %v1232
        %1450 = vmatpush1.bf16.msra.mxu0 %v1231
        %1451 = vmatprep.subr.bf16.mxu0 %v1239
        %1452 = vmatpush1.bf16.msra.mxu0 %v1238
        %1453 = vmatprep.subr.bf16.mxu0 %v1246
        %1454 = vmatpush1.bf16.msra.mxu0 %v1245
        %1455 = vmatprep.subr.bf16.mxu0 %v1253
        %1456 = vmatpush1.bf16.msra.mxu0 %v1252
        %1457 = vmatprep.subr.bf16.mxu0 %v1260
        %1458 = vmatpush1.bf16.msra.mxu0 %v1259
        %1459 = vmatprep.subr.bf16.mxu0 %v1267
        %1460 = vmatpush1.bf16.msra.mxu0 %v1266
        %1461 = vmatprep.subr.bf16.mxu0 %v1274
        %1462 = vmatpush1.bf16.msra.mxu0 %v1273
        %1463 = vmatprep.mubr.bf16.mxu0 %v811
        %1464 = vmatmul.mubr.bf16.gmra.mrb[0].mxu0 %v810
        %v1465 = vpop.f32.mrb[0].mxu0
        %v1466 = vadd.f32 0.0, %v1465
        %v1467 = vpop.f32.mrb[0].mxu0
        %v1468 = vadd.f32 0.0, %v1467
        %v1469 = vpop.f32.mrb[0].mxu0
        %v1470 = vpop.f32.mrb[0].mxu0
        %1471 = vdwg.mxu0
        %1472 = vmatprep.subr.bf16.mxu0 %v1171
        %1473 = vmatpush1.bf16.msra.mxu0 %v1170
        %1474 = vmatprep.subr.bf16.mxu0 %v1178
        %1475 = vmatpush1.bf16.msra.mxu0 %v1177
        %1476 = vmatprep.subr.bf16.mxu0 %v1185
        %1477 = vmatpush1.bf16.msra.mxu0 %v1184
        %1478 = vmatprep.subr.bf16.mxu0 %v1192
        %1479 = vmatpush1.bf16.msra.mxu0 %v1191
        %1480 = vmatprep.subr.bf16.mxu0 %v1199
        %1481 = vmatpush1.bf16.msra.mxu0 %v1198
        %1482 = vmatprep.subr.bf16.mxu0 %v1206
        %1483 = vmatpush1.bf16.msra.mxu0 %v1205
        %1484 = vmatprep.subr.bf16.mxu0 %v1213
        %1485 = vmatpush1.bf16.msra.mxu0 %v1212
        %1486 = vmatprep.subr.bf16.mxu0 %v1220
        %1487 = vmatpush1.bf16.msra.mxu0 %v1219
        %1488 = vmatprep.subr.bf16.mxu0 %v1227
        %1489 = vmatpush1.bf16.msra.mxu0 %v1226
        %1490 = vmatprep.subr.bf16.mxu0 %v1234
        %1491 = vmatpush1.bf16.msra.mxu0 %v1233
        %1492 = vmatprep.subr.bf16.mxu0 %v1241
        %1493 = vmatpush1.bf16.msra.mxu0 %v1240
        %1494 = vmatprep.subr.bf16.mxu0 %v1248
        %1495 = vmatpush1.bf16.msra.mxu0 %v1247
        %1496 = vmatprep.subr.bf16.mxu0 %v1255
        %1497 = vmatpush1.bf16.msra.mxu0 %v1254
        %1498 = vmatprep.subr.bf16.mxu0 %v1262
        %1499 = vmatpush1.bf16.msra.mxu0 %v1261
        %1500 = vmatprep.subr.bf16.mxu0 %v1269
        %1501 = vmatpush1.bf16.msra.mxu0 %v1268
        %1502 = vmatprep.subr.bf16.mxu0 %v1276
        %1503 = vmatpush1.bf16.msra.mxu0 %v1275
        %1504 = vmatprep.mubr.bf16.mxu0 %v811
        %1505 = vmatmul.mubr.bf16.gmra.mrb[0].mxu0 %v810
        %v1506 = vpop.f32.mrb[0].mxu0
        %v1507 = vadd.f32 0.0, %v1506
        %v1508 = vpop.f32.mrb[0].mxu0
        %v1509 = vadd.f32 0.0, %v1508
        %v1510 = vpop.f32.mrb[0].mxu0
        %v1511 = vpop.f32.mrb[0].mxu0
        %1512 = vdwg.mxu0
        %1513 = vmatprep.subr.bf16.mxu0 0
        %1514 = vmatpush1.bf16.msra.mxu0 %v1172
        %1515 = vmatprep.subr.bf16.mxu0 0
        %1516 = vmatpush1.bf16.msra.mxu0 %v1179
        %1517 = vmatprep.subr.bf16.mxu0 0
        %1518 = vmatpush1.bf16.msra.mxu0 %v1186
        %1519 = vmatprep.subr.bf16.mxu0 0
        %1520 = vmatpush1.bf16.msra.mxu0 %v1193
        %1521 = vmatprep.subr.bf16.mxu0 0
        %1522 = vmatpush1.bf16.msra.mxu0 %v1200
        %1523 = vmatprep.subr.bf16.mxu0 0
        %1524 = vmatpush1.bf16.msra.mxu0 %v1207
        %1525 = vmatprep.subr.bf16.mxu0 0
        %1526 = vmatpush1.bf16.msra.mxu0 %v1214
        %1527 = vmatprep.subr.bf16.mxu0 0
        %1528 = vmatpush1.bf16.msra.mxu0 %v1221
        %1529 = vmatprep.subr.bf16.mxu0 0
        %1530 = vmatpush1.bf16.msra.mxu0 %v1228
        %1531 = vmatprep.subr.bf16.mxu0 0
        %1532 = vmatpush1.bf16.msra.mxu0 %v1235
        %1533 = vmatprep.subr.bf16.mxu0 0
        %1534 = vmatpush1.bf16.msra.mxu0 %v1242
        %1535 = vmatprep.subr.bf16.mxu0 0
        %1536 = vmatpush1.bf16.msra.mxu0 %v1249
        %1537 = vmatprep.subr.bf16.mxu0 0
        %1538 = vmatpush1.bf16.msra.mxu0 %v1256
        %1539 = vmatprep.subr.bf16.mxu0 0
        %1540 = vmatpush1.bf16.msra.mxu0 %v1263
        %1541 = vmatprep.subr.bf16.mxu0 0
        %1542 = vmatpush1.bf16.msra.mxu0 %v1270
        %1543 = vmatprep.subr.bf16.mxu0 0
        %1544 = vmatpush1.bf16.msra.mxu0 %v1277
        %1545 = vmatprep.mubr.bf16.mxu0 %v811
        %1546 = vmatmul.mubr.bf16.gmra.mrb[0].mxu0 %v810
        %v1547 = vpop.f32.mrb[0].mxu0
        %v1548 = vadd.f32 0.0, %v1547
        %v1549 = vpop.f32.mrb[0].mxu0
        %v1550 = vpop.f32.mrb[0].mxu0
        %v1551 = vpop.f32.mrb[0].mxu0
        %1552 = vdwg.mxu0
        %v1553 = vadd.f32 %v671, %v1425
        %v1554 = vadd.f32 %v672, %v1427
        %v1555 = vadd.f32 %v673, %v1466
        %v1556 = vadd.f32 %v674, %v1468
        %v1557 = vadd.f32 %v675, %v1507
        %v1558 = vadd.f32 %v676, %v1509
        %v1559 = vadd.f32 %v677, %v1548
        %1560 = vst [vmem:[#allocation2] sm:$0xff] %v1553
        %1561 = vst [vmem:[#allocation2 + $0x8] sm:$0xff] %v1554
        %1562 = vst [vmem:[#allocation2 + $0x10] sm:$0xff] %v1555
        %1563 = vst [vmem:[#allocation2 + $0x18] sm:$0xff] %v1556
        %1564 = vst [vmem:[#allocation2 + $0x20] sm:$0xff] %v1557
        %1565 = vst [vmem:[#allocation2 + $0x28] sm:$0xff] %v1558
        %1566 = vst [vmem:[#allocation2 + $0x30] sm:$0xff] %v1559
        %p1567 = scmp.eq.s32.totalorder %s38, 6
        // Predicated region
        $region113: #{tpu_custom_call.1} parent=71 // pred_check
          %p1568 = pneg %p1567
        $region114: #{tpu_custom_call.1} parent=71 // pred_check_branch
          %1570 = sbr.rel (%p1568) target = $region116
        $region115: #{tpu_custom_call.1} parent=71 // pred_region
          %v1571 = vld [vmem:[#allocation2] sm:$0xff]
          %v1572 = vld [vmem:[#allocation2 + $0x8] sm:$0xff]
          %v1573 = vld [vmem:[#allocation2 + $0x10] sm:$0xff]
          %v1574 = vld [vmem:[#allocation2 + $0x18] sm:$0xff]
          %v1575 = vld [vmem:[#allocation2 + $0x20] sm:$0xff]
          %v1576 = vld [vmem:[#allocation2 + $0x28] sm:$0xff]
          %v1577 = vld [vmem:[#allocation2 + $0x30] sm:$0xff]
          %v1578 = vmax.f32 %v1571, 0.0
          %v1579 = vmax.f32 %v1572, 0.0
          %v1580 = vmax.f32 %v1573, 0.0
          %v1581 = vmax.f32 %v1574, 0.0
          %v1582 = vmax.f32 %v1575, 0.0
          %v1583 = vmax.f32 %v1576, 0.0
          %v1584 = vmax.f32 %v1577, 0.0
          %v1585 = vpack.c.bf16 %v1578, %v1578
          %v1586 = vpack.c.bf16 %v1579, %v1579
          %v1587 = vpack.c.bf16 %v1580, %v1580
          %v1588 = vpack.c.bf16 %v1581, %v1581
          %v1589 = vpack.c.bf16 %v1582, %v1582
          %v1590 = vpack.c.bf16 %v1583, %v1583
          %v1591 = vpack.c.bf16 %v1584, %v1584
          %v1592 = vld [vmem:[#allocation8] sm:$0xff]
          %v1593 = vld [vmem:[#allocation8 + $0x8] sm:$0xff]
          %v1594 = vld [vmem:[#allocation8 + $0x10] sm:$0xff]
          %v1595 = vld [vmem:[#allocation8 + $0x18] sm:$0xff]
          %v1596 = vld [vmem:[#allocation8 + $0x20] sm:$0xff]
          %v1597 = vld [vmem:[#allocation8 + $0x28] sm:$0xff]
          %v1598 = vld [vmem:[#allocation8 + $0x30] sm:$0xff]
          %v1599 = vld [vmem:[#allocation8 + $0x38] sm:$0xff]
          %v1600 = vld [vmem:[#allocation8 + $0x40] sm:$0xff]
          %v1601 = vld [vmem:[#allocation8 + $0x48] sm:$0xff]
          %v1602 = vld [vmem:[#allocation8 + $0x50] sm:$0xff]
          %v1603 = vld [vmem:[#allocation8 + $0x58] sm:$0xff]
          %v1604 = vld [vmem:[#allocation8 + $0x60] sm:$0xff]
          %v1605 = vld [vmem:[#allocation8 + $0x68] sm:$0xff]
          %v1606 = vld [vmem:[#allocation8 + $0x70] sm:$0xff]
          %v1607 = vld [vmem:[#allocation8 + $0x78] sm:$0xff]
          %v1608 = vld [vmem:[#allocation8 + $0x80] sm:$0xff]
          %v1609 = vld [vmem:[#allocation8 + $0x88] sm:$0xff]
          %v1610 = vld [vmem:[#allocation8 + $0x90] sm:$0xff]
          %v1611 = vld [vmem:[#allocation8 + $0x98] sm:$0xff]
          %v1612 = vld [vmem:[#allocation8 + $0xa0] sm:$0xff]
          %v1613 = vld [vmem:[#allocation8 + $0xa8] sm:$0xff]
          %v1614 = vld [vmem:[#allocation8 + $0xb0] sm:$0xff]
          %v1615 = vld [vmem:[#allocation8 + $0xb8] sm:$0xff]
          %v1616 = vld [vmem:[#allocation8 + $0xc0] sm:$0xff]
          %v1617 = vld [vmem:[#allocation8 + $0xc8] sm:$0xff]
          %v1618 = vld [vmem:[#allocation8 + $0xd0] sm:$0xff]
          %v1619 = vld [vmem:[#allocation8 + $0xd8] sm:$0xff]
          %v1620 = vld [vmem:[#allocation8 + $0xe0] sm:$0xff]
          %v1621 = vld [vmem:[#allocation8 + $0xe8] sm:$0xff]
          %v1622 = vld [vmem:[#allocation8 + $0xf0] sm:$0xff]
          %v1623 = vld [vmem:[#allocation8 + $0xf8] sm:$0xff]
          %v1624 = vld [vmem:[#allocation8 + $0x100] sm:$0xff]
          %v1625 = vld [vmem:[#allocation8 + $0x108] sm:$0xff]
          %v1626 = vld [vmem:[#allocation8 + $0x110] sm:$0xff]
          %v1627 = vld [vmem:[#allocation8 + $0x118] sm:$0xff]
          %v1628 = vld [vmem:[#allocation8 + $0x120] sm:$0xff]
          %v1629 = vld [vmem:[#allocation8 + $0x128] sm:$0xff]
          %v1630 = vld [vmem:[#allocation8 + $0x130] sm:$0xff]
          %v1631 = vld [vmem:[#allocation8 + $0x138] sm:$0xff]
          %v1632 = vld [vmem:[#allocation8 + $0x140] sm:$0xff]
          %v1633 = vld [vmem:[#allocation8 + $0x148] sm:$0xff]
          %v1634 = vld [vmem:[#allocation8 + $0x150] sm:$0xff]
          %v1635 = vld [vmem:[#allocation8 + $0x158] sm:$0xff]
          %v1636 = vld [vmem:[#allocation8 + $0x160] sm:$0xff]
          %v1637 = vld [vmem:[#allocation8 + $0x168] sm:$0xff]
          %v1638 = vld [vmem:[#allocation8 + $0x170] sm:$0xff]
          %v1639 = vld [vmem:[#allocation8 + $0x178] sm:$0xff]
          %v1640 = vld [vmem:[#allocation8 + $0x180] sm:$0xff]
          %v1641 = vld [vmem:[#allocation8 + $0x188] sm:$0xff]
          %v1642 = vld [vmem:[#allocation8 + $0x190] sm:$0xff]
          %v1643 = vld [vmem:[#allocation8 + $0x198] sm:$0xff]
          %v1644 = vld [vmem:[#allocation8 + $0x1a0] sm:$0xff]
          %v1645 = vld [vmem:[#allocation8 + $0x1a8] sm:$0xff]
          %v1646 = vld [vmem:[#allocation8 + $0x1b0] sm:$0xff]
          %v1647 = vld [vmem:[#allocation8 + $0x1b8] sm:$0xff]
          %v1648 = vld [vmem:[#allocation8 + $0x1c0] sm:$0xff]
          %v1649 = vld [vmem:[#allocation8 + $0x1c8] sm:$0xff]
          %v1650 = vld [vmem:[#allocation8 + $0x1d0] sm:$0xff]
          %v1651 = vld [vmem:[#allocation8 + $0x1d8] sm:$0xff]
          %v1652 = vld [vmem:[#allocation8 + $0x1e0] sm:$0xff]
          %v1653 = vld [vmem:[#allocation8 + $0x1e8] sm:$0xff]
          %v1654 = vld [vmem:[#allocation8 + $0x1f0] sm:$0xff]
          %v1655 = vld [vmem:[#allocation8 + $0x1f8] sm:$0xff]
          %v1656 = vld [vmem:[#allocation8 + $0x200] sm:$0xff]
          %v1657 = vld [vmem:[#allocation8 + $0x208] sm:$0xff]
          %v1658 = vld [vmem:[#allocation8 + $0x210] sm:$0xff]
          %v1659 = vld [vmem:[#allocation8 + $0x218] sm:$0xff]
          %v1660 = vld [vmem:[#allocation8 + $0x220] sm:$0xff]
          %v1661 = vld [vmem:[#allocation8 + $0x228] sm:$0xff]
          %v1662 = vld [vmem:[#allocation8 + $0x230] sm:$0xff]
          %v1663 = vld [vmem:[#allocation8 + $0x238] sm:$0xff]
          %v1664 = vld [vmem:[#allocation8 + $0x240] sm:$0xff]
          %v1665 = vld [vmem:[#allocation8 + $0x248] sm:$0xff]
          %v1666 = vld [vmem:[#allocation8 + $0x250] sm:$0xff]
          %v1667 = vld [vmem:[#allocation8 + $0x258] sm:$0xff]
          %v1668 = vld [vmem:[#allocation8 + $0x260] sm:$0xff]
          %v1669 = vld [vmem:[#allocation8 + $0x268] sm:$0xff]
          %v1670 = vld [vmem:[#allocation8 + $0x270] sm:$0xff]
          %v1671 = vld [vmem:[#allocation8 + $0x278] sm:$0xff]
          %v1672 = vld [vmem:[#allocation8 + $0x280] sm:$0xff]
          %v1673 = vld [vmem:[#allocation8 + $0x288] sm:$0xff]
          %v1674 = vld [vmem:[#allocation8 + $0x290] sm:$0xff]
          %v1675 = vld [vmem:[#allocation8 + $0x298] sm:$0xff]
          %v1676 = vld [vmem:[#allocation8 + $0x2a0] sm:$0xff]
          %v1677 = vld [vmem:[#allocation8 + $0x2a8] sm:$0xff]
          %v1678 = vld [vmem:[#allocation8 + $0x2b0] sm:$0xff]
          %v1679 = vld [vmem:[#allocation8 + $0x2b8] sm:$0xff]
          %v1680 = vld [vmem:[#allocation8 + $0x2c0] sm:$0xff]
          %v1681 = vld [vmem:[#allocation8 + $0x2c8] sm:$0xff]
          %v1682 = vld [vmem:[#allocation8 + $0x2d0] sm:$0xff]
          %v1683 = vld [vmem:[#allocation8 + $0x2d8] sm:$0xff]
          %v1684 = vld [vmem:[#allocation8 + $0x2e0] sm:$0xff]
          %v1685 = vld [vmem:[#allocation8 + $0x2e8] sm:$0xff]
          %v1686 = vld [vmem:[#allocation8 + $0x2f0] sm:$0xff]
          %v1687 = vld [vmem:[#allocation8 + $0x2f8] sm:$0xff]
          %v1688 = vld [vmem:[#allocation8 + $0x300] sm:$0xff]
          %v1689 = vld [vmem:[#allocation8 + $0x308] sm:$0xff]
          %v1690 = vld [vmem:[#allocation8 + $0x310] sm:$0xff]
          %v1691 = vld [vmem:[#allocation8 + $0x318] sm:$0xff]
          %v1692 = vld [vmem:[#allocation8 + $0x320] sm:$0xff]
          %v1693 = vld [vmem:[#allocation8 + $0x328] sm:$0xff]
          %v1694 = vld [vmem:[#allocation8 + $0x330] sm:$0xff]
          %v1695 = vld [vmem:[#allocation8 + $0x338] sm:$0xff]
          %v1696 = vld [vmem:[#allocation8 + $0x340] sm:$0xff]
          %v1697 = vld [vmem:[#allocation8 + $0x348] sm:$0xff]
          %v1698 = vld [vmem:[#allocation8 + $0x350] sm:$0xff]
          %v1699 = vld [vmem:[#allocation8 + $0x358] sm:$0xff]
          %v1700 = vld [vmem:[#allocation8 + $0x360] sm:$0xff]
          %v1701 = vld [vmem:[#allocation8 + $0x368] sm:$0xff]
          %v1702 = vld [vmem:[#allocation8 + $0x370] sm:$0xff]
          %v1703 = vld [vmem:[#allocation8 + $0x378] sm:$0xff]
          %v1704 = vld [vmem:[#allocation10] sm:$0x3]
          %v1706 = vlaneseq
          %v1707 = vshrl.u32 %v1706, 7
          %v1708 = vsub.s32 0, %v1707
          %v1709 = vrot.slane %v1704, %v1708
          %v1710 = vlaneseq
          %v1711 = vshrl.u32 %v1710, 7
          %v1712 = vsub.s32 1, %v1711
          %v1713 = vrot.slane %v1704, %v1712
          %v1828 = vunpack.c.l.b16 %v1592
          %v1829 = vunpack.c.h.b16 %v1592
          %v1830 = vunpack.c.l.b16 %v1593
          %v1831 = vunpack.c.h.b16 %v1593
          %v1832 = vunpack.c.l.b16 %v1594
          %v1833 = vunpack.c.h.b16 %v1594
          %v1834 = vunpack.c.l.b16 %v1595
          %v1835 = vunpack.c.h.b16 %v1595
          %v1836 = vunpack.c.l.b16 %v1596
          %v1837 = vunpack.c.h.b16 %v1596
          %v1838 = vunpack.c.l.b16 %v1597
          %v1839 = vunpack.c.h.b16 %v1597
          %v1840 = vunpack.c.l.b16 %v1598
          %v1841 = vunpack.c.h.b16 %v1598
          %v1842 = vunpack.c.l.b16 %v1599
          %v1843 = vunpack.c.h.b16 %v1599
          %v1844 = vunpack.c.l.b16 %v1600
          %v1845 = vunpack.c.h.b16 %v1600
          %v1846 = vunpack.c.l.b16 %v1601
          %v1847 = vunpack.c.h.b16 %v1601
          %v1848 = vunpack.c.l.b16 %v1602
          %v1849 = vunpack.c.h.b16 %v1602
          %v1850 = vunpack.c.l.b16 %v1603
          %v1851 = vunpack.c.h.b16 %v1603
          %v1852 = vunpack.c.l.b16 %v1604
          %v1853 = vunpack.c.h.b16 %v1604
          %v1854 = vunpack.c.l.b16 %v1605
          %v1855 = vunpack.c.h.b16 %v1605
          %v1856 = vunpack.c.l.b16 %v1606
          %v1857 = vunpack.c.h.b16 %v1606
          %v1858 = vunpack.c.l.b16 %v1607
          %v1859 = vunpack.c.h.b16 %v1607
          %v1860 = vunpack.c.l.b16 %v1608
          %v1861 = vunpack.c.h.b16 %v1608
          %v1862 = vunpack.c.l.b16 %v1609
          %v1863 = vunpack.c.h.b16 %v1609
          %v1864 = vunpack.c.l.b16 %v1610
          %v1865 = vunpack.c.h.b16 %v1610
          %v1866 = vunpack.c.l.b16 %v1611
          %v1867 = vunpack.c.h.b16 %v1611
          %v1868 = vunpack.c.l.b16 %v1612
          %v1869 = vunpack.c.h.b16 %v1612
          %v1870 = vunpack.c.l.b16 %v1613
          %v1871 = vunpack.c.h.b16 %v1613
          %v1872 = vunpack.c.l.b16 %v1614
          %v1873 = vunpack.c.h.b16 %v1614
          %v1874 = vunpack.c.l.b16 %v1615
          %v1875 = vunpack.c.h.b16 %v1615
          %v1876 = vunpack.c.l.b16 %v1616
          %v1877 = vunpack.c.h.b16 %v1616
          %v1878 = vunpack.c.l.b16 %v1617
          %v1879 = vunpack.c.h.b16 %v1617
          %v1880 = vunpack.c.l.b16 %v1618
          %v1881 = vunpack.c.h.b16 %v1618
          %v1882 = vunpack.c.l.b16 %v1619
          %v1883 = vunpack.c.h.b16 %v1619
          %v1884 = vunpack.c.l.b16 %v1620
          %v1885 = vunpack.c.h.b16 %v1620
          %v1886 = vunpack.c.l.b16 %v1621
          %v1887 = vunpack.c.h.b16 %v1621
          %v1888 = vunpack.c.l.b16 %v1622
          %v1889 = vunpack.c.h.b16 %v1622
          %v1890 = vunpack.c.l.b16 %v1623
          %v1891 = vunpack.c.h.b16 %v1623
          %v1892 = vunpack.c.l.b16 %v1624
          %v1893 = vunpack.c.h.b16 %v1624
          %v1894 = vunpack.c.l.b16 %v1625
          %v1895 = vunpack.c.h.b16 %v1625
          %v1896 = vunpack.c.l.b16 %v1626
          %v1897 = vunpack.c.h.b16 %v1626
          %v1898 = vunpack.c.l.b16 %v1627
          %v1899 = vunpack.c.h.b16 %v1627
          %v1900 = vunpack.c.l.b16 %v1628
          %v1901 = vunpack.c.h.b16 %v1628
          %v1902 = vunpack.c.l.b16 %v1629
          %v1903 = vunpack.c.h.b16 %v1629
          %v1904 = vunpack.c.l.b16 %v1630
          %v1905 = vunpack.c.h.b16 %v1630
          %v1906 = vunpack.c.l.b16 %v1631
          %v1907 = vunpack.c.h.b16 %v1631
          %v1908 = vunpack.c.l.b16 %v1632
          %v1909 = vunpack.c.h.b16 %v1632
          %v1910 = vunpack.c.l.b16 %v1633
          %v1911 = vunpack.c.h.b16 %v1633
          %v1912 = vunpack.c.l.b16 %v1634
          %v1913 = vunpack.c.h.b16 %v1634
          %v1914 = vunpack.c.l.b16 %v1635
          %v1915 = vunpack.c.h.b16 %v1635
          %v1916 = vunpack.c.l.b16 %v1636
          %v1917 = vunpack.c.h.b16 %v1636
          %v1918 = vunpack.c.l.b16 %v1637
          %v1919 = vunpack.c.h.b16 %v1637
          %v1920 = vunpack.c.l.b16 %v1638
          %v1921 = vunpack.c.h.b16 %v1638
          %v1922 = vunpack.c.l.b16 %v1639
          %v1923 = vunpack.c.h.b16 %v1639
          %v1924 = vunpack.c.l.b16 %v1640
          %v1925 = vunpack.c.h.b16 %v1640
          %v1926 = vunpack.c.l.b16 %v1641
          %v1927 = vunpack.c.h.b16 %v1641
          %v1928 = vunpack.c.l.b16 %v1642
          %v1929 = vunpack.c.h.b16 %v1642
          %v1930 = vunpack.c.l.b16 %v1643
          %v1931 = vunpack.c.h.b16 %v1643
          %v1932 = vunpack.c.l.b16 %v1644
          %v1933 = vunpack.c.h.b16 %v1644
          %v1934 = vunpack.c.l.b16 %v1645
          %v1935 = vunpack.c.h.b16 %v1645
          %v1936 = vunpack.c.l.b16 %v1646
          %v1937 = vunpack.c.h.b16 %v1646
          %v1938 = vunpack.c.l.b16 %v1647
          %v1939 = vunpack.c.h.b16 %v1647
          %v1940 = vunpack.c.l.b16 %v1648
          %v1941 = vunpack.c.h.b16 %v1648
          %v1942 = vunpack.c.l.b16 %v1649
          %v1943 = vunpack.c.h.b16 %v1649
          %v1944 = vunpack.c.l.b16 %v1650
          %v1945 = vunpack.c.h.b16 %v1650
          %v1946 = vunpack.c.l.b16 %v1651
          %v1947 = vunpack.c.h.b16 %v1651
          %v1948 = vunpack.c.l.b16 %v1652
          %v1949 = vunpack.c.h.b16 %v1652
          %v1950 = vunpack.c.l.b16 %v1653
          %v1951 = vunpack.c.h.b16 %v1653
          %v1952 = vunpack.c.l.b16 %v1654
          %v1953 = vunpack.c.h.b16 %v1654
          %v1954 = vunpack.c.l.b16 %v1655
          %v1955 = vunpack.c.h.b16 %v1655
          %v1956 = vunpack.c.l.b16 %v1656
          %v1957 = vunpack.c.h.b16 %v1656
          %v1958 = vunpack.c.l.b16 %v1657
          %v1959 = vunpack.c.h.b16 %v1657
          %v1960 = vunpack.c.l.b16 %v1658
          %v1961 = vunpack.c.h.b16 %v1658
          %v1962 = vunpack.c.l.b16 %v1659
          %v1963 = vunpack.c.h.b16 %v1659
          %v1964 = vunpack.c.l.b16 %v1660
          %v1965 = vunpack.c.h.b16 %v1660
          %v1966 = vunpack.c.l.b16 %v1661
          %v1967 = vunpack.c.h.b16 %v1661
          %v1968 = vunpack.c.l.b16 %v1662
          %v1969 = vunpack.c.h.b16 %v1662
          %v1970 = vunpack.c.l.b16 %v1663
          %v1971 = vunpack.c.h.b16 %v1663
          %v1972 = vunpack.c.l.b16 %v1664
          %v1973 = vunpack.c.h.b16 %v1664
          %v1974 = vunpack.c.l.b16 %v1665
          %v1975 = vunpack.c.h.b16 %v1665
          %v1976 = vunpack.c.l.b16 %v1666
          %v1977 = vunpack.c.h.b16 %v1666
          %v1978 = vunpack.c.l.b16 %v1667
          %v1979 = vunpack.c.h.b16 %v1667
          %v1980 = vunpack.c.l.b16 %v1668
          %v1981 = vunpack.c.h.b16 %v1668
          %v1982 = vunpack.c.l.b16 %v1669
          %v1983 = vunpack.c.h.b16 %v1669
          %v1984 = vunpack.c.l.b16 %v1670
          %v1985 = vunpack.c.h.b16 %v1670
          %v1986 = vunpack.c.l.b16 %v1671
          %v1987 = vunpack.c.h.b16 %v1671
          %v1988 = vunpack.c.l.b16 %v1672
          %v1989 = vunpack.c.h.b16 %v1672
          %v1990 = vunpack.c.l.b16 %v1673
          %v1991 = vunpack.c.h.b16 %v1673
          %v1992 = vunpack.c.l.b16 %v1674
          %v1993 = vunpack.c.h.b16 %v1674
          %v1994 = vunpack.c.l.b16 %v1675
          %v1995 = vunpack.c.h.b16 %v1675
          %v1996 = vunpack.c.l.b16 %v1676
          %v1997 = vunpack.c.h.b16 %v1676
          %v1998 = vunpack.c.l.b16 %v1677
          %v1999 = vunpack.c.h.b16 %v1677
          %v2000 = vunpack.c.l.b16 %v1678
          %v2001 = vunpack.c.h.b16 %v1678
          %v2002 = vunpack.c.l.b16 %v1679
          %v2003 = vunpack.c.h.b16 %v1679
          %v2004 = vunpack.c.l.b16 %v1680
          %v2005 = vunpack.c.h.b16 %v1680
          %v2006 = vunpack.c.l.b16 %v1681
          %v2007 = vunpack.c.h.b16 %v1681
          %v2008 = vunpack.c.l.b16 %v1682
          %v2009 = vunpack.c.h.b16 %v1682
          %v2010 = vunpack.c.l.b16 %v1683
          %v2011 = vunpack.c.h.b16 %v1683
          %v2012 = vunpack.c.l.b16 %v1684
          %v2013 = vunpack.c.h.b16 %v1684
          %v2014 = vunpack.c.l.b16 %v1685
          %v2015 = vunpack.c.h.b16 %v1685
          %v2016 = vunpack.c.l.b16 %v1686
          %v2017 = vunpack.c.h.b16 %v1686
          %v2018 = vunpack.c.l.b16 %v1687
          %v2019 = vunpack.c.h.b16 %v1687
          %v2020 = vunpack.c.l.b16 %v1688
          %v2021 = vunpack.c.h.b16 %v1688
          %v2022 = vunpack.c.l.b16 %v1689
          %v2023 = vunpack.c.h.b16 %v1689
          %v2024 = vunpack.c.l.b16 %v1690
          %v2025 = vunpack.c.h.b16 %v1690
          %v2026 = vunpack.c.l.b16 %v1691
          %v2027 = vunpack.c.h.b16 %v1691
          %v2028 = vunpack.c.l.b16 %v1692
          %v2029 = vunpack.c.h.b16 %v1692
          %v2030 = vunpack.c.l.b16 %v1693
          %v2031 = vunpack.c.h.b16 %v1693
          %v2032 = vunpack.c.l.b16 %v1694
          %v2033 = vunpack.c.h.b16 %v1694
          %v2034 = vunpack.c.l.b16 %v1695
          %v2035 = vunpack.c.h.b16 %v1695
          %v2036 = vunpack.c.l.b16 %v1696
          %v2037 = vunpack.c.h.b16 %v1696
          %v2038 = vunpack.c.l.b16 %v1697
          %v2039 = vunpack.c.h.b16 %v1697
          %v2040 = vunpack.c.l.b16 %v1698
          %v2041 = vunpack.c.h.b16 %v1698
          %v2042 = vunpack.c.l.b16 %v1699
          %v2043 = vunpack.c.h.b16 %v1699
          %v2044 = vunpack.c.l.b16 %v1700
          %v2045 = vunpack.c.h.b16 %v1700
          %v2046 = vunpack.c.l.b16 %v1701
          %v2047 = vunpack.c.h.b16 %v1701
          %v2048 = vunpack.c.l.b16 %v1702
          %v2049 = vunpack.c.h.b16 %v1702
          %v2050 = vunpack.c.l.b16 %v1703
          %v2051 = vunpack.c.h.b16 %v1703
          %v2052 = vpack.c.b16 %v1830, %v1828
          %v2053 = vpack.c.b16 %v1831, %v1829
          %v2054 = vpack.c.b16 %v1834, %v1832
          %v2055 = vpack.c.b16 %v1835, %v1833
          %v2056 = vpack.c.b16 %v1838, %v1836
          %v2057 = vpack.c.b16 %v1839, %v1837
          %v2058 = vpack.c.b16 %v1842, %v1840
          %v2059 = vpack.c.b16 %v1843, %v1841
          %v2060 = vpack.c.b16 %v1846, %v1844
          %v2061 = vpack.c.b16 %v1847, %v1845
          %v2062 = vpack.c.b16 %v1850, %v1848
          %v2063 = vpack.c.b16 %v1851, %v1849
          %v2064 = vpack.c.b16 %v1854, %v1852
          %v2065 = vpack.c.b16 %v1855, %v1853
          %v2066 = vpack.c.b16 %v1858, %v1856
          %v2067 = vpack.c.b16 %v1859, %v1857
          %v2068 = vpack.c.b16 %v1862, %v1860
          %v2069 = vpack.c.b16 %v1863, %v1861
          %v2070 = vpack.c.b16 %v1866, %v1864
          %v2071 = vpack.c.b16 %v1867, %v1865
          %v2072 = vpack.c.b16 %v1870, %v1868
          %v2073 = vpack.c.b16 %v1871, %v1869
          %v2074 = vpack.c.b16 %v1874, %v1872
          %v2075 = vpack.c.b16 %v1875, %v1873
          %v2076 = vpack.c.b16 %v1878, %v1876
          %v2077 = vpack.c.b16 %v1879, %v1877
          %v2078 = vpack.c.b16 %v1882, %v1880
          %v2079 = vpack.c.b16 %v1883, %v1881
          %v2080 = vpack.c.b16 %v1886, %v1884
          %v2081 = vpack.c.b16 %v1887, %v1885
          %v2082 = vpack.c.b16 %v1890, %v1888
          %v2083 = vpack.c.b16 %v1891, %v1889
          %v2084 = vpack.c.b16 %v1894, %v1892
          %v2085 = vpack.c.b16 %v1895, %v1893
          %v2086 = vpack.c.b16 %v1898, %v1896
          %v2087 = vpack.c.b16 %v1899, %v1897
          %v2088 = vpack.c.b16 %v1902, %v1900
          %v2089 = vpack.c.b16 %v1903, %v1901
          %v2090 = vpack.c.b16 %v1906, %v1904
          %v2091 = vpack.c.b16 %v1907, %v1905
          %v2092 = vpack.c.b16 %v1910, %v1908
          %v2093 = vpack.c.b16 %v1911, %v1909
          %v2094 = vpack.c.b16 %v1914, %v1912
          %v2095 = vpack.c.b16 %v1915, %v1913
          %v2096 = vpack.c.b16 %v1918, %v1916
          %v2097 = vpack.c.b16 %v1919, %v1917
          %v2098 = vpack.c.b16 %v1922, %v1920
          %v2099 = vpack.c.b16 %v1923, %v1921
          %v2100 = vpack.c.b16 %v1926, %v1924
          %v2101 = vpack.c.b16 %v1927, %v1925
          %v2102 = vpack.c.b16 %v1930, %v1928
          %v2103 = vpack.c.b16 %v1931, %v1929
          %v2104 = vpack.c.b16 %v1934, %v1932
          %v2105 = vpack.c.b16 %v1935, %v1933
          %v2106 = vpack.c.b16 %v1938, %v1936
          %v2107 = vpack.c.b16 %v1939, %v1937
          %v2108 = vpack.c.b16 %v1942, %v1940
          %v2109 = vpack.c.b16 %v1943, %v1941
          %v2110 = vpack.c.b16 %v1946, %v1944
          %v2111 = vpack.c.b16 %v1947, %v1945
          %v2112 = vpack.c.b16 %v1950, %v1948
          %v2113 = vpack.c.b16 %v1951, %v1949
          %v2114 = vpack.c.b16 %v1954, %v1952
          %v2115 = vpack.c.b16 %v1955, %v1953
          %v2116 = vpack.c.b16 %v1958, %v1956
          %v2117 = vpack.c.b16 %v1959, %v1957
          %v2118 = vpack.c.b16 %v1962, %v1960
          %v2119 = vpack.c.b16 %v1963, %v1961
          %v2120 = vpack.c.b16 %v1966, %v1964
          %v2121 = vpack.c.b16 %v1967, %v1965
          %v2122 = vpack.c.b16 %v1970, %v1968
          %v2123 = vpack.c.b16 %v1971, %v1969
          %v2124 = vpack.c.b16 %v1974, %v1972
          %v2125 = vpack.c.b16 %v1975, %v1973
          %v2126 = vpack.c.b16 %v1978, %v1976
          %v2127 = vpack.c.b16 %v1979, %v1977
          %v2128 = vpack.c.b16 %v1982, %v1980
          %v2129 = vpack.c.b16 %v1983, %v1981
          %v2130 = vpack.c.b16 %v1986, %v1984
          %v2131 = vpack.c.b16 %v1987, %v1985
          %v2132 = vpack.c.b16 %v1990, %v1988
          %v2133 = vpack.c.b16 %v1991, %v1989
          %v2134 = vpack.c.b16 %v1994, %v1992
          %v2135 = vpack.c.b16 %v1995, %v1993
          %v2136 = vpack.c.b16 %v1998, %v1996
          %v2137 = vpack.c.b16 %v1999, %v1997
          %v2138 = vpack.c.b16 %v2002, %v2000
          %v2139 = vpack.c.b16 %v2003, %v2001
          %v2140 = vpack.c.b16 %v2006, %v2004
          %v2141 = vpack.c.b16 %v2007, %v2005
          %v2142 = vpack.c.b16 %v2010, %v2008
          %v2143 = vpack.c.b16 %v2011, %v2009
          %v2144 = vpack.c.b16 %v2014, %v2012
          %v2145 = vpack.c.b16 %v2015, %v2013
          %v2146 = vpack.c.b16 %v2018, %v2016
          %v2147 = vpack.c.b16 %v2019, %v2017
          %v2148 = vpack.c.b16 %v2022, %v2020
          %v2149 = vpack.c.b16 %v2023, %v2021
          %v2150 = vpack.c.b16 %v2026, %v2024
          %v2151 = vpack.c.b16 %v2027, %v2025
          %v2152 = vpack.c.b16 %v2030, %v2028
          %v2153 = vpack.c.b16 %v2031, %v2029
          %v2154 = vpack.c.b16 %v2034, %v2032
          %v2155 = vpack.c.b16 %v2035, %v2033
          %v2156 = vpack.c.b16 %v2038, %v2036
          %v2157 = vpack.c.b16 %v2039, %v2037
          %v2158 = vpack.c.b16 %v2042, %v2040
          %v2159 = vpack.c.b16 %v2043, %v2041
          %v2160 = vpack.c.b16 %v2046, %v2044
          %v2161 = vpack.c.b16 %v2047, %v2045
          %v2162 = vpack.c.b16 %v2050, %v2048
          %v2163 = vpack.c.b16 %v2051, %v2049
          %2276 = vmatprep.subr.bf16.mxu0 %v2053
          %2277 = vmatpush1.bf16.msra.mxu0 %v2052
          %2278 = vmatprep.subr.bf16.mxu0 %v2055
          %2279 = vmatpush1.bf16.msra.mxu0 %v2054
          %2280 = vmatprep.subr.bf16.mxu0 %v2057
          %2281 = vmatpush1.bf16.msra.mxu0 %v2056
          %2282 = vmatprep.subr.bf16.mxu0 %v2059
          %2283 = vmatpush1.bf16.msra.mxu0 %v2058
          %2284 = vmatprep.subr.bf16.mxu0 %v2061
          %2285 = vmatpush1.bf16.msra.mxu0 %v2060
          %2286 = vmatprep.subr.bf16.mxu0 %v2063
          %2287 = vmatpush1.bf16.msra.mxu0 %v2062
          %2288 = vmatprep.subr.bf16.mxu0 %v2065
          %2289 = vmatpush1.bf16.msra.mxu0 %v2064
          %2290 = vmatprep.subr.bf16.mxu0 %v2067
          %2291 = vmatpush1.bf16.msra.mxu0 %v2066
          %2292 = vmatprep.subr.bf16.mxu0 %v2069
          %2293 = vmatpush1.bf16.msra.mxu0 %v2068
          %2294 = vmatprep.subr.bf16.mxu0 %v2071
          %2295 = vmatpush1.bf16.msra.mxu0 %v2070
          %2296 = vmatprep.subr.bf16.mxu0 %v2073
          %2297 = vmatpush1.bf16.msra.mxu0 %v2072
          %2298 = vmatprep.subr.bf16.mxu0 %v2075
          %2299 = vmatpush1.bf16.msra.mxu0 %v2074
          %2300 = vmatprep.subr.bf16.mxu0 %v2077
          %2301 = vmatpush1.bf16.msra.mxu0 %v2076
          %2302 = vmatprep.subr.bf16.mxu0 %v2079
          %2303 = vmatpush1.bf16.msra.mxu0 %v2078
          %2304 = vmatprep.subr.bf16.mxu0 %v2081
          %2305 = vmatpush1.bf16.msra.mxu0 %v2080
          %2306 = vmatprep.subr.bf16.mxu0 %v2083
          %2307 = vmatpush1.bf16.msra.mxu0 %v2082
          %2308 = vmatprep.mubr.bf16.mxu0 %v1586
          %2309 = vmatmul.mubr.bf16.gmra.mrb[0].mxu0 %v1585
          %v2310 = vpop.f32.mrb[0].mxu0
          %v2311 = vadd.f32 %v1709, %v2310
          %v2312 = vpop.f32.mrb[0].mxu0
          %v2313 = vadd.f32 %v1713, %v2312
          %v2314 = vpop.f32.mrb[0].mxu0
          %v2315 = vpop.f32.mrb[0].mxu0
          %2316 = vdwg.mxu0
          %2317 = vmatprep.subr.bf16.mxu0 %v2085
          %2318 = vmatpush1.bf16.msra.mxu0 %v2084
          %2319 = vmatprep.subr.bf16.mxu0 %v2087
          %2320 = vmatpush1.bf16.msra.mxu0 %v2086
          %2321 = vmatprep.subr.bf16.mxu0 %v2089
          %2322 = vmatpush1.bf16.msra.mxu0 %v2088
          %2323 = vmatprep.subr.bf16.mxu0 %v2091
          %2324 = vmatpush1.bf16.msra.mxu0 %v2090
          %2325 = vmatprep.subr.bf16.mxu0 %v2093
          %2326 = vmatpush1.bf16.msra.mxu0 %v2092
          %2327 = vmatprep.subr.bf16.mxu0 %v2095
          %2328 = vmatpush1.bf16.msra.mxu0 %v2094
          %2329 = vmatprep.subr.bf16.mxu0 %v2097
          %2330 = vmatpush1.bf16.msra.mxu0 %v2096
          %2331 = vmatprep.subr.bf16.mxu0 %v2099
          %2332 = vmatpush1.bf16.msra.mxu0 %v2098
          %2333 = vmatprep.subr.bf16.mxu0 %v2101
          %2334 = vmatpush1.bf16.msra.mxu0 %v2100
          %2335 = vmatprep.subr.bf16.mxu0 %v2103
          %2336 = vmatpush1.bf16.msra.mxu0 %v2102
          %2337 = vmatprep.subr.bf16.mxu0 %v2105
          %2338 = vmatpush1.bf16.msra.mxu0 %v2104
          %2339 = vmatprep.subr.bf16.mxu0 %v2107
          %2340 = vmatpush1.bf16.msra.mxu0 %v2106
          %2341 = vmatprep.subr.bf16.mxu0 %v2109
          %2342 = vmatpush1.bf16.msra.mxu0 %v2108
          %2343 = vmatprep.subr.bf16.mxu0 %v2111
          %2344 = vmatpush1.bf16.msra.mxu0 %v2110
          %2345 = vmatprep.subr.bf16.mxu0 %v2113
          %2346 = vmatpush1.bf16.msra.mxu0 %v2112
          %2347 = vmatprep.subr.bf16.mxu0 %v2115
          %2348 = vmatpush1.bf16.msra.mxu0 %v2114
          %2349 = vmatprep.mubr.bf16.mxu0 %v1588
          %2350 = vmatmul.mubr.bf16.gmra.mrb[0].mxu0 %v1587
          %v2351 = vpop.f32.mrb[0].mxu0
          %v2352 = vadd.f32 %v2311, %v2351
          %v2353 = vpop.f32.mrb[0].mxu0
          %v2354 = vadd.f32 %v2313, %v2353
          %v2355 = vpop.f32.mrb[0].mxu0
          %v2356 = vpop.f32.mrb[0].mxu0
          %2357 = vdwg.mxu0
          %2358 = vmatprep.subr.bf16.mxu0 %v2117
          %2359 = vmatpush1.bf16.msra.mxu0 %v2116
          %2360 = vmatprep.subr.bf16.mxu0 %v2119
          %2361 = vmatpush1.bf16.msra.mxu0 %v2118
          %2362 = vmatprep.subr.bf16.mxu0 %v2121
          %2363 = vmatpush1.bf16.msra.mxu0 %v2120
          %2364 = vmatprep.subr.bf16.mxu0 %v2123
          %2365 = vmatpush1.bf16.msra.mxu0 %v2122
          %2366 = vmatprep.subr.bf16.mxu0 %v2125
          %2367 = vmatpush1.bf16.msra.mxu0 %v2124
          %2368 = vmatprep.subr.bf16.mxu0 %v2127
          %2369 = vmatpush1.bf16.msra.mxu0 %v2126
          %2370 = vmatprep.subr.bf16.mxu0 %v2129
          %2371 = vmatpush1.bf16.msra.mxu0 %v2128
          %2372 = vmatprep.subr.bf16.mxu0 %v2131
          %2373 = vmatpush1.bf16.msra.mxu0 %v2130
          %2374 = vmatprep.subr.bf16.mxu0 %v2133
          %2375 = vmatpush1.bf16.msra.mxu0 %v2132
          %2376 = vmatprep.subr.bf16.mxu0 %v2135
          %2377 = vmatpush1.bf16.msra.mxu0 %v2134
          %2378 = vmatprep.subr.bf16.mxu0 %v2137
          %2379 = vmatpush1.bf16.msra.mxu0 %v2136
          %2380 = vmatprep.subr.bf16.mxu0 %v2139
          %2381 = vmatpush1.bf16.msra.mxu0 %v2138
          %2382 = vmatprep.subr.bf16.mxu0 %v2141
          %2383 = vmatpush1.bf16.msra.mxu0 %v2140
          %2384 = vmatprep.subr.bf16.mxu0 %v2143
          %2385 = vmatpush1.bf16.msra.mxu0 %v2142
          %2386 = vmatprep.subr.bf16.mxu0 %v2145
          %2387 = vmatpush1.bf16.msra.mxu0 %v2144
          %2388 = vmatprep.subr.bf16.mxu0 %v2147
          %2389 = vmatpush1.bf16.msra.mxu0 %v2146
          %2390 = vmatprep.mubr.bf16.mxu0 %v1590
          %2391 = vmatmul.mubr.bf16.gmra.mrb[0].mxu0 %v1589
          %v2392 = vpop.f32.mrb[0].mxu0
          %v2393 = vadd.f32 %v2352, %v2392
          %v2394 = vpop.f32.mrb[0].mxu0
          %v2395 = vadd.f32 %v2354, %v2394
          %v2396 = vpop.f32.mrb[0].mxu0
          %v2397 = vpop.f32.mrb[0].mxu0
          %2398 = vdwg.mxu0
          %2399 = vmatprep.subr.bf16.mxu0 %v2149
          %2400 = vmatpush1.bf16.msra.mxu0 %v2148
          %2401 = vmatprep.subr.bf16.mxu0 %v2151
          %2402 = vmatpush1.bf16.msra.mxu0 %v2150
          %2403 = vmatprep.subr.bf16.mxu0 %v2153
          %2404 = vmatpush1.bf16.msra.mxu0 %v2152
          %2405 = vmatprep.subr.bf16.mxu0 %v2155
          %2406 = vmatpush1.bf16.msra.mxu0 %v2154
          %2407 = vmatprep.subr.bf16.mxu0 %v2157
          %2408 = vmatpush1.bf16.msra.mxu0 %v2156
          %2409 = vmatprep.subr.bf16.mxu0 %v2159
          %2410 = vmatpush1.bf16.msra.mxu0 %v2158
          %2411 = vmatprep.subr.bf16.mxu0 %v2161
          %2412 = vmatpush1.bf16.msra.mxu0 %v2160
          %2413 = vmatprep.subr.bf16.mxu0 %v2163
          %2414 = vmatpush1.bf16.msra.mxu0 %v2162
          %2415 = vmatprep.subr.bf16.mxu0 0
          %2416 = vmatpush1.bf16.msra.mxu0 0
          %2417 = vmatprep.subr.bf16.mxu0 0
          %2418 = vmatpush1.bf16.msra.mxu0 0
          %2419 = vmatprep.subr.bf16.mxu0 0
          %2420 = vmatpush1.bf16.msra.mxu0 0
          %2421 = vmatprep.subr.bf16.mxu0 0
          %2422 = vmatpush1.bf16.msra.mxu0 0
          %2423 = vmatprep.subr.bf16.mxu0 0
          %2424 = vmatpush1.bf16.msra.mxu0 0
          %2425 = vmatprep.subr.bf16.mxu0 0
          %2426 = vmatpush1.bf16.msra.mxu0 0
          %2427 = vmatprep.subr.bf16.mxu0 0
          %2428 = vmatpush1.bf16.msra.mxu0 0
          %2429 = vmatprep.subr.bf16.mxu0 0
          %2430 = vmatpush1.bf16.msra.mxu0 0
          %2431 = vmatprep.mubr.bf16.mxu0 0
          %2432 = vmatmul.mubr.bf16.gmra.mrb[0].mxu0 %v1591
          %v2433 = vpop.f32.mrb[0].mxu0
          %v2434 = vadd.f32 %v2393, %v2433
          %v2435 = vpop.f32.mrb[0].mxu0
          %v2436 = vadd.f32 %v2395, %v2435
          %v2437 = vpop.f32.mrb[0].mxu0
          %v2438 = vpop.f32.mrb[0].mxu0
          %2439 = vdwg.mxu0
          %v2440 = vmax.f32 %v2434, 0.0
          %v2441 = vmax.f32 %v2436, 0.0
          %v2442 = vpack.c.bf16 %v2440, %v2440
          %v2443 = vpack.c.bf16 %v2441, %v2441
          %v2444 = vld [vmem:[%s6] sm:$0xf]
          %v2445 = vld [vmem:[%s6 + $0x4] sm:$0xf]
          %v2446 = vld [vmem:[%s6 + $0x8] sm:$0xf]
          %v2447 = vld [vmem:[%s6 + $0xc] sm:$0xf]
          %v2448 = vld [vmem:[%s6 + $0x10] sm:$0xf]
          %v2449 = vld [vmem:[%s6 + $0x14] sm:$0xf]
          %v2450 = vld [vmem:[%s6 + $0x18] sm:$0xf]
          %v2451 = vld [vmem:[%s6 + $0x1c] sm:$0xf]
          %v2452 = vld [vmem:[%s6 + $0x20] sm:$0xf]
          %v2453 = vld [vmem:[%s6 + $0x24] sm:$0xf]
          %v2454 = vld [vmem:[%s6 + $0x28] sm:$0xf]
          %v2455 = vld [vmem:[%s6 + $0x2c] sm:$0xf]
          %v2456 = vld [vmem:[%s6 + $0x30] sm:$0xf]
          %v2457 = vld [vmem:[%s6 + $0x34] sm:$0xf]
          %v2458 = vld [vmem:[%s6 + $0x38] sm:$0xf]
          %v2459 = vld [vmem:[%s6 + $0x3c] sm:$0xf]
          %v2460 = vld [vmem:[%s6 + $0x40] sm:$0xf]
          %v2461 = vld [vmem:[%s6 + $0x44] sm:$0xf]
          %v2462 = vld [vmem:[%s6 + $0x48] sm:$0xf]
          %v2463 = vld [vmem:[%s6 + $0x4c] sm:$0xf]
          %v2464 = vld [vmem:[%s6 + $0x50] sm:$0xf]
          %v2465 = vld [vmem:[%s6 + $0x54] sm:$0xf]
          %v2466 = vld [vmem:[%s6 + $0x58] sm:$0xf]
          %v2467 = vld [vmem:[%s6 + $0x5c] sm:$0xf]
          %v2468 = vld [vmem:[%s6 + $0x60] sm:$0xf]
          %v2469 = vld [vmem:[%s6 + $0x64] sm:$0xf]
          %v2470 = vld [vmem:[%s6 + $0x68] sm:$0xf]
          %v2471 = vld [vmem:[%s6 + $0x6c] sm:$0xf]
          %v2472 = vld [vmem:[%s6 + $0x70] sm:$0xf]
          %v2473 = vld [vmem:[%s6 + $0x74] sm:$0xf]
          %v2474 = vld [vmem:[%s6 + $0x78] sm:$0xf]
          %v2475 = vld [vmem:[%s6 + $0x7c] sm:$0xf]
          %v2476 = vld [vmem:[#allocation11] sm:$0x1]
          %v2478 = vlaneseq
          %v2479 = vshrl.u32 %v2478, 7
          %v2480 = vsub.s32 0, %v2479
          %v2481 = vrot.slane %v2476, %v2480
          %v2515 = vunpack.c.l.b16 %v2444
          %v2516 = vunpack.c.l.b16 %v2445
          %v2517 = vunpack.c.l.b16 %v2446
          %v2518 = vunpack.c.l.b16 %v2447
          %v2519 = vunpack.c.l.b16 %v2448
          %v2520 = vunpack.c.l.b16 %v2449
          %v2521 = vunpack.c.l.b16 %v2450
          %v2522 = vunpack.c.l.b16 %v2451
          %v2523 = vunpack.c.l.b16 %v2452
          %v2524 = vunpack.c.l.b16 %v2453
          %v2525 = vunpack.c.l.b16 %v2454
          %v2526 = vunpack.c.l.b16 %v2455
          %v2527 = vunpack.c.l.b16 %v2456
          %v2528 = vunpack.c.l.b16 %v2457
          %v2529 = vunpack.c.l.b16 %v2458
          %v2530 = vunpack.c.l.b16 %v2459
          %v2531 = vunpack.c.l.b16 %v2460
          %v2532 = vunpack.c.l.b16 %v2461
          %v2533 = vunpack.c.l.b16 %v2462
          %v2534 = vunpack.c.l.b16 %v2463
          %v2535 = vunpack.c.l.b16 %v2464
          %v2536 = vunpack.c.l.b16 %v2465
          %v2537 = vunpack.c.l.b16 %v2466
          %v2538 = vunpack.c.l.b16 %v2467
          %v2539 = vunpack.c.l.b16 %v2468
          %v2540 = vunpack.c.l.b16 %v2469
          %v2541 = vunpack.c.l.b16 %v2470
          %v2542 = vunpack.c.l.b16 %v2471
          %v2543 = vunpack.c.l.b16 %v2472
          %v2544 = vunpack.c.l.b16 %v2473
          %v2545 = vunpack.c.l.b16 %v2474
          %v2546 = vunpack.c.l.b16 %v2475
          %v2547 = vpack.c.b16 %v2516, %v2515
          %v2548 = vpack.c.b16 %v2518, %v2517
          %v2549 = vpack.c.b16 %v2520, %v2519
          %v2550 = vpack.c.b16 %v2522, %v2521
          %v2551 = vpack.c.b16 %v2524, %v2523
          %v2552 = vpack.c.b16 %v2526, %v2525
          %v2553 = vpack.c.b16 %v2528, %v2527
          %v2554 = vpack.c.b16 %v2530, %v2529
          %v2555 = vpack.c.b16 %v2532, %v2531
          %v2556 = vpack.c.b16 %v2534, %v2533
          %v2557 = vpack.c.b16 %v2536, %v2535
          %v2558 = vpack.c.b16 %v2538, %v2537
          %v2559 = vpack.c.b16 %v2540, %v2539
          %v2560 = vpack.c.b16 %v2542, %v2541
          %v2561 = vpack.c.b16 %v2544, %v2543
          %v2562 = vpack.c.b16 %v2546, %v2545
          %2579 = vmatprep.subr.bf16.mxu0 0
          %2580 = vmatpush1.bf16.msra.mxu0 %v2547
          %2581 = vmatprep.subr.bf16.mxu0 0
          %2582 = vmatpush1.bf16.msra.mxu0 %v2548
          %2583 = vmatprep.subr.bf16.mxu0 0
          %2584 = vmatpush1.bf16.msra.mxu0 %v2549
          %2585 = vmatprep.subr.bf16.mxu0 0
          %2586 = vmatpush1.bf16.msra.mxu0 %v2550
          %2587 = vmatprep.subr.bf16.mxu0 0
          %2588 = vmatpush1.bf16.msra.mxu0 %v2551
          %2589 = vmatprep.subr.bf16.mxu0 0
          %2590 = vmatpush1.bf16.msra.mxu0 %v2552
          %2591 = vmatprep.subr.bf16.mxu0 0
          %2592 = vmatpush1.bf16.msra.mxu0 %v2553
          %2593 = vmatprep.subr.bf16.mxu0 0
          %2594 = vmatpush1.bf16.msra.mxu0 %v2554
          %2595 = vmatprep.subr.bf16.mxu0 0
          %2596 = vmatpush1.bf16.msra.mxu0 %v2555
          %2597 = vmatprep.subr.bf16.mxu0 0
          %2598 = vmatpush1.bf16.msra.mxu0 %v2556
          %2599 = vmatprep.subr.bf16.mxu0 0
          %2600 = vmatpush1.bf16.msra.mxu0 %v2557
          %2601 = vmatprep.subr.bf16.mxu0 0
          %2602 = vmatpush1.bf16.msra.mxu0 %v2558
          %2603 = vmatprep.subr.bf16.mxu0 0
          %2604 = vmatpush1.bf16.msra.mxu0 %v2559
          %2605 = vmatprep.subr.bf16.mxu0 0
          %2606 = vmatpush1.bf16.msra.mxu0 %v2560
          %2607 = vmatprep.subr.bf16.mxu0 0
          %2608 = vmatpush1.bf16.msra.mxu0 %v2561
          %2609 = vmatprep.subr.bf16.mxu0 0
          %2610 = vmatpush1.bf16.msra.mxu0 %v2562
          %2611 = vmatprep.mubr.bf16.mxu0 %v2443
          %2612 = vmatmul.mubr.bf16.gmra.mrb[0].mxu0 %v2442
          %v2613 = vpop.f32.mrb[0].mxu0
          %v2614 = vadd.f32 %v2481, %v2613
          %v2615 = vpop.f32.mrb[0].mxu0
          %v2616 = vpop.f32.mrb[0].mxu0
          %v2617 = vpop.f32.mrb[0].mxu0
          %2618 = vdwg.mxu0
          %v2619 = vmax.f32 %v2614, 0.0
          %v2620 = vpack.c.bf16 %v2619, %v2619
          %v2621 = vld [vmem:[%s616] sm:$0xf]
          %v2622 = vld [vmem:[#allocation13] sm:$0x1]
          %v2623 = vld [vmem:[#allocation14] sm:$0x1]
          %v2625 = vlaneseq
          %v2626 = vshrl.u32 %v2625, 7
          %v2627 = vsub.s32 0, %v2626
          %v2628 = vrot.slane %v2623, %v2627
          %vm2630 = vcmask 15360
          %v2632 = vsel %vm2630, %v2621, 0
          %vm2634 = vcmask 1040384
          %v2636 = vsel %vm2634, %v2622, 0
          %2638 = vmatprep.subr.bf16.mxu0 0
          %2639 = vmatpush1.bf16.msra.mxu0 %v2636
          %2640 = vmatprep.subr.bf16.mxu0 0
          %2641 = vmatpush1.bf16.msra.mxu0 0
          %2642 = vmatprep.subr.bf16.mxu0 0
          %2643 = vmatpush1.bf16.msra.mxu0 0
          %2644 = vmatprep.subr.bf16.mxu0 0
          %2645 = vmatpush1.bf16.msra.mxu0 0
          %2646 = vmatprep.subr.bf16.mxu0 0
          %2647 = vmatpush1.bf16.msra.mxu0 0
          %2648 = vmatprep.subr.bf16.mxu0 0
          %2649 = vmatpush1.bf16.msra.mxu0 0
          %2650 = vmatprep.subr.bf16.mxu0 0
          %2651 = vmatpush1.bf16.msra.mxu0 0
          %2652 = vmatprep.subr.bf16.mxu0 0
          %2653 = vmatpush1.bf16.msra.mxu0 0
          %2654 = vmatprep.subr.bf16.mxu0 0
          %2655 = vmatpush1.bf16.msra.mxu0 0
          %2656 = vmatprep.subr.bf16.mxu0 0
          %2657 = vmatpush1.bf16.msra.mxu0 0
          %2658 = vmatprep.subr.bf16.mxu0 0
          %2659 = vmatpush1.bf16.msra.mxu0 0
          %2660 = vmatprep.subr.bf16.mxu0 0
          %2661 = vmatpush1.bf16.msra.mxu0 0
          %2662 = vmatprep.subr.bf16.mxu0 0
          %2663 = vmatpush1.bf16.msra.mxu0 0
          %2664 = vmatprep.subr.bf16.mxu0 0
          %2665 = vmatpush1.bf16.msra.mxu0 0
          %2666 = vmatprep.subr.bf16.mxu0 0
          %2667 = vmatpush1.bf16.msra.mxu0 0
          %2668 = vmatprep.subr.bf16.mxu0 0
          %2669 = vmatpush1.bf16.msra.mxu0 0
          %2670 = vmatprep.mubr.bf16.mxu0 0
          %2671 = vmatmul.mubr.bf16.gmra.mrb[0].mxu0 %v2632
          %v2672 = vpop.f32.mrb[0].mxu0
          %v2673 = vadd.f32 %v2628, %v2672
          %v2674 = vpop.f32.mrb[0].mxu0
          %v2675 = vpop.f32.mrb[0].mxu0
          %v2676 = vpop.f32.mrb[0].mxu0
          %2677 = vdwg.mxu0
          %v2678 = vmax.f32 %v2673, 0.0
          %v2679 = vpack.c.bf16 %v2678, %v2678
          %v2680 = vld [vmem:[%s10] sm:$0xf]
          %v2681 = vld [vmem:[%s10 + $0x4] sm:$0xf]
          %v2682 = vld [vmem:[%s10 + $0x8] sm:$0xf]
          %v2683 = vld [vmem:[%s10 + $0xc] sm:$0xf]
          %v2684 = vld [vmem:[%s11] sm:$0xf]
          %v2685 = vld [vmem:[%s11 + $0x4] sm:$0xf]
          %v2686 = vld [vmem:[%s11 + $0x8] sm:$0xf]
          %v2687 = vld [vmem:[%s11 + $0xc] sm:$0xf]
          %v2692 = vunpack.c.l.b16 %v2684
          %v2693 = vunpack.c.l.b16 %v2685
          %v2694 = vunpack.c.l.b16 %v2686
          %v2695 = vunpack.c.l.b16 %v2687
          %v2696 = vpack.c.b16 %v2693, %v2692
          %v2697 = vpack.c.b16 %v2695, %v2694
          %vm2700 = vcmask 261120
          %v2702 = vsel %vm2700, %v2679, 0
          %2704 = vmatprep.subr.bf16.mxu0 0
          %2705 = vmatpush1.bf16.msra.mxu0 %v2696
          %2706 = vmatprep.subr.bf16.mxu0 0
          %2707 = vmatpush1.bf16.msra.mxu0 %v2697
          %2708 = vmatprep.subr.bf16.mxu0 0
          %2709 = vmatpush1.bf16.msra.mxu0 0
          %2710 = vmatprep.subr.bf16.mxu0 0
          %2711 = vmatpush1.bf16.msra.mxu0 0
          %2712 = vmatprep.subr.bf16.mxu0 0
          %2713 = vmatpush1.bf16.msra.mxu0 0
          %2714 = vmatprep.subr.bf16.mxu0 0
          %2715 = vmatpush1.bf16.msra.mxu0 0
          %2716 = vmatprep.subr.bf16.mxu0 0
          %2717 = vmatpush1.bf16.msra.mxu0 0
          %2718 = vmatprep.subr.bf16.mxu0 0
          %2719 = vmatpush1.bf16.msra.mxu0 0
          %2720 = vmatprep.subr.bf16.mxu0 0
          %2721 = vmatpush1.bf16.msra.mxu0 0
          %2722 = vmatprep.subr.bf16.mxu0 0
          %2723 = vmatpush1.bf16.msra.mxu0 0
          %2724 = vmatprep.subr.bf16.mxu0 0
          %2725 = vmatpush1.bf16.msra.mxu0 0
          %2726 = vmatprep.subr.bf16.mxu0 0
          %2727 = vmatpush1.bf16.msra.mxu0 0
          %2728 = vmatprep.subr.bf16.mxu0 0
          %2729 = vmatpush1.bf16.msra.mxu0 0
          %2730 = vmatprep.subr.bf16.mxu0 0
          %2731 = vmatpush1.bf16.msra.mxu0 0
          %2732 = vmatprep.subr.bf16.mxu0 0
          %2733 = vmatpush1.bf16.msra.mxu0 0
          %2734 = vmatprep.subr.bf16.mxu0 0
          %2735 = vmatpush1.bf16.msra.mxu0 0
          %2736 = vmatprep.mubr.bf16.mxu0 0
          %2737 = vmatmul.mubr.bf16.gmra.mrb[0].mxu0 %v2702
          %v2738 = vpop.f32.mrb[0].mxu0
          %v2739 = vadd.f32 0.0, %v2738
          %v2740 = vpop.f32.mrb[0].mxu0
          %v2741 = vpop.f32.mrb[0].mxu0
          %v2742 = vpop.f32.mrb[0].mxu0
          %2743 = vdwg.mxu0
          %v2748 = vunpack.c.l.b16 %v2680
          %v2749 = vunpack.c.l.b16 %v2681
          %v2750 = vunpack.c.l.b16 %v2682
          %v2751 = vunpack.c.l.b16 %v2683
          %v2752 = vpack.c.b16 %v2749, %v2748
          %v2753 = vpack.c.b16 %v2751, %v2750
          %v2757 = vsel %vm2700, %v2620, 0
          %2759 = vmatprep.subr.bf16.mxu0 0
          %2760 = vmatpush1.bf16.msra.mxu0 %v2752
          %2761 = vmatprep.subr.bf16.mxu0 0
          %2762 = vmatpush1.bf16.msra.mxu0 %v2753
          %2763 = vmatprep.subr.bf16.mxu0 0
          %2764 = vmatpush1.bf16.msra.mxu0 0
          %2765 = vmatprep.subr.bf16.mxu0 0
          %2766 = vmatpush1.bf16.msra.mxu0 0
          %2767 = vmatprep.subr.bf16.mxu0 0
          %2768 = vmatpush1.bf16.msra.mxu0 0
          %2769 = vmatprep.subr.bf16.mxu0 0
          %2770 = vmatpush1.bf16.msra.mxu0 0
          %2771 = vmatprep.subr.bf16.mxu0 0
          %2772 = vmatpush1.bf16.msra.mxu0 0
          %2773 = vmatprep.subr.bf16.mxu0 0
          %2774 = vmatpush1.bf16.msra.mxu0 0
          %2775 = vmatprep.subr.bf16.mxu0 0
          %2776 = vmatpush1.bf16.msra.mxu0 0
          %2777 = vmatprep.subr.bf16.mxu0 0
          %2778 = vmatpush1.bf16.msra.mxu0 0
          %2779 = vmatprep.subr.bf16.mxu0 0
          %2780 = vmatpush1.bf16.msra.mxu0 0
          %2781 = vmatprep.subr.bf16.mxu0 0
          %2782 = vmatpush1.bf16.msra.mxu0 0
          %2783 = vmatprep.subr.bf16.mxu0 0
          %2784 = vmatpush1.bf16.msra.mxu0 0
          %2785 = vmatprep.subr.bf16.mxu0 0
          %2786 = vmatpush1.bf16.msra.mxu0 0
          %2787 = vmatprep.subr.bf16.mxu0 0
          %2788 = vmatpush1.bf16.msra.mxu0 0
          %2789 = vmatprep.subr.bf16.mxu0 0
          %2790 = vmatpush1.bf16.msra.mxu0 0
          %2791 = vmatprep.mubr.bf16.mxu0 0
          %2792 = vmatmul.mubr.bf16.gmra.mrb[0].mxu0 %v2757
          %v2793 = vpop.f32.mrb[0].mxu0
          %v2794 = vadd.f32 %v2739, %v2793
          %v2795 = vpop.f32.mrb[0].mxu0
          %v2796 = vpop.f32.mrb[0].mxu0
          %v2797 = vpop.f32.mrb[0].mxu0
          %2798 = vdwg.mxu0
          %v2799 = vld [vmem:[#allocation16] sm:$0x1]
          %v2801 = vlaneseq
          %v2802 = vshrl.u32 %v2801, 7
          %v2803 = vsub.s32 0, %v2802
          %v2804 = vrot.slane %v2799, %v2803
          %v2806 = vadd.f32 %v2794, %v2804
          %vm2807 = vcmask 31744
          %v2808 = vsel %vm2807, %v2806, -inf
          %2809 = vmax.xlane.f32.xlu0 %v2808
          %v2810 = vpop.xlane.xlu0 %2809
          %v2811 = vsub.f32 %v2806, %v2810
          %v2812 = vmul.f32 %v2811, 1.442695
          %v2813 = vpow.pop %v2812
          %v2814 = vsel %vm2807, %v2813, 0.0
          %2815 = vadd.xlane.f32.xlu0 %v2814
          %v2816 = vpop.xlane.xlu0 %2815
          %v2817 = vrcp.pop %v2816
          %v2818 = vmul.f32 %v2813, %v2817
          %2819 = vst.msk [vmem:[%s621] sm:$0xff] %vm2807, %v2818
        $region116: #{tpu_custom_call.1} parent=71 // pred_fallthru
          _
        %p2820 = scmp.lt.s32.totalorder %s37, 0
        %s2821 = scalar_select %p2820, %s37, 0
        %s2822 = smul.addr %s2821, 8
        %s2823 = scalar_lea.vmem %s13, %s2822
        // Predicated region
        $region117: #{tpu_custom_call.1} parent=71 // pred_check
          %p2824 = pneg %p353
        $region118: #{tpu_custom_call.1} parent=71 // pred_check_branch
          %2826 = sbr.rel (%p2824) target = $region120
        $region119: #{tpu_custom_call.1} parent=71 // pred_region
          _
        $region120: #{tpu_custom_call.1} parent=71 // pred_fallthru
          _
        // Predicated region
        $region121: #{tpu_custom_call.1} parent=71 // pred_check
          %p2827 = pneg %p353
        $region122: #{tpu_custom_call.1} parent=71 // pred_check_branch
          %2829 = sbr.rel (%p2827) target = $region124
        $region123: #{tpu_custom_call.1} parent=71 // pred_region
          %p2830 = scmp.lt.s32.totalorder %s37, 0
          %s2831 = scalar_select %p2830, %s37, 0
          %s2832 = smul.addr %s2831, 8
          %s2833 = scalar_lea.vmem %s13, %s2832
        $region124: #{tpu_custom_call.1} parent=71 // pred_fallthru
          _
      $region72: #{tpu_custom_call.1} parent=5 // pred_fallthru
        _
      %p2834 = scmp.le.s32.totalorder 2, %s28
      // Predicated region
      $region125: #{tpu_custom_call.1} parent=5 // pred_check
        %p2835 = pneg %p2834
      $region126: #{tpu_custom_call.1} parent=5 // pred_check_branch
        %2837 = sbr.rel (%p2835) target = $region128
      $region127: #{tpu_custom_call.1} parent=5 // pred_region
        %s2838 = ssub.s32 %s28, 2
      $region128: #{tpu_custom_call.1} parent=5 // pred_fallthru
        _
    $region6: #{tpu_custom_call.1} parent=1 // loop_footer
      %s32 = sadd.s32 1, %s28
    $region7: #{tpu_custom_call.1} parent=1 // loop_footer_branch
      %27 = sbr.rel target = $region3
    $region8: #{tpu_custom_call.1} parent=1 // loop_exit
      _
    %2839 = vsyncpa [#allocation4], 1
    %s2840 = scalar_lea.sflag [#allocation4], 1
    %2841 = vsyncpa %s2840, 1
    %2842 = vsyncpa [#allocation6], 1
    %s2843 = scalar_lea.sflag [#allocation6], 1
    %2844 = vsyncpa %s2843, 1
    %2845 = vsyncpa [#allocation9], 1
    %2846 = vsyncpa [#allocation12], 1
    %2847 = vsyncpa [#allocation15], 1

</llo_original>
